<compile_context>
chip_gen: v7x
topology: tpu7x:2x2x1
jax: 0.10.0
libtpu: 0.0.40
codegen_flags: <defaults>
</compile_context>

<pallas_src>
import functools

import jax
import jax.numpy as jnp
from jax import lax
from jax.experimental import pallas as pl
from jax.experimental.pallas import tpu as pltpu


def _round_up(x: int, m: int) -> int:
    return ((x + m - 1) // m) * m


# ---------------------------------------------------------------------------
# Kernel 1: merged weight  W_m = W_pre + sum_i clamp(w_i, 0, 1) * dW_i
# ---------------------------------------------------------------------------
def merge_weight_kernel(tw_ref, pw_ref, tvw_ref, wm_ref):
    """One (tn, tk) tile of the merged weight.

    tw_ref : SMEM (T,)           raw task-wise weights (scalar prefetch)
    pw_ref : VMEM (tn, tk)       pretrained weight tile
    tvw_ref: VMEM (T, tn, tk)    task-vector weight-delta tiles
    wm_ref : VMEM (tn, tk)       merged weight tile (f32 output used as the accumulator)
    """
    wm_ref[...] = pw_ref[...].astype(jnp.float32)
    for i in range(tvw_ref.shape[0]):                 # T is small & static -> unrolled
        alpha = jnp.clip(tw_ref[i], 0.0, 1.0)         # clamp_weights=True
        wm_ref[...] += alpha * tvw_ref[i].astype(jnp.float32)


def _merge_weights(task_wise_weight, pre_w, task_w, *, tn, tk):
    T, Np, Kp = task_w.shape
    grid = (Np // tn, Kp // tk)
    return pl.pallas_call(
        merge_weight_kernel,
        out_shape=jax.ShapeDtypeStruct((Np, Kp), jnp.float32),
        grid_spec=pltpu.PrefetchScalarGridSpec(
            num_scalar_prefetch=1,
            grid=grid,
            in_specs=[
                pl.BlockSpec((tn, tk), lambda n, k, tw: (n, k)),       # pretrained W
                pl.BlockSpec((T, tn, tk), lambda n, k, tw: (0, n, k)),  # task-vector Ws
            ],
            out_specs=pl.BlockSpec((tn, tk), lambda n, k, tw: (n, k)),
        ),
        compiler_params=pltpu.CompilerParams(
            dimension_semantics=("parallel", "parallel")),
    )(task_wise_weight, pre_w, task_w)


# ---------------------------------------------------------------------------
# Kernel 2: y = x @ W_m.T + b_m   (bias merged on-the-fly at finalize; K reduction)
# ---------------------------------------------------------------------------
def merged_matmul_kernel(tw_ref, x_ref, w_ref, pb_ref, tb_ref, y_ref, acc_ref):
    """tw_ref : SMEM (T,)        raw task-wise weights (scalar prefetch)
    x_ref  : VMEM (tm, tk)       activation tile
    w_ref  : VMEM (tn, tk)       merged weight tile (PyTorch [out, in] layout)
    pb_ref : VMEM (1, tn)        pretrained bias tile
    tb_ref : VMEM (T, tn)        task-vector bias-delta tiles
    y_ref  : VMEM (tm, tn)       output tile
    acc_ref: VMEM (tm, tn) f32   accumulator scratch (persists across K)
    """
    k = pl.program_id(2)

    @pl.when(k == 0)
    def _init():
        acc_ref[...] = jnp.zeros_like(acc_ref)

    # Contract the shared K axis directly ("NT" matmul) -> no transpose of w_ref.
    acc_ref[...] += lax.dot_general(
        x_ref[...], w_ref[...],
        dimension_numbers=(((1,), (1,)), ((), ())),
        preferred_element_type=jnp.float32,
    )

    @pl.when(k == pl.num_programs(2) - 1)
    def _finalize():
        b = pb_ref[...].astype(jnp.float32)            # (1, tn)
        for i in range(tb_ref.shape[0]):
            alpha = jnp.clip(tw_ref[i], 0.0, 1.0)      # clamp_weights=True
            b = b + alpha * tb_ref[pl.ds(i, 1), :].astype(jnp.float32)
        y_ref[...] = (acc_ref[...] + b).astype(y_ref.dtype)


def _merged_matmul(task_wise_weight, x, w_merged, pre_b2, task_b, *, tm, tn, tk):
    Mp, Kp = x.shape
    Np = w_merged.shape[0]
    T = task_b.shape[0]
    grid = (Mp // tm, Np // tn, Kp // tk)
    return pl.pallas_call(
        merged_matmul_kernel,
        out_shape=jax.ShapeDtypeStruct((Mp, Np), x.dtype),
        grid_spec=pltpu.PrefetchScalarGridSpec(
            num_scalar_prefetch=1,
            grid=grid,
            in_specs=[
                pl.BlockSpec((tm, tk), lambda m, n, k, tw: (m, k)),  # x
                pl.BlockSpec((tn, tk), lambda m, n, k, tw: (n, k)),  # merged W
                pl.BlockSpec((1, tn), lambda m, n, k, tw: (0, n)),   # pretrained b
                pl.BlockSpec((T, tn), lambda m, n, k, tw: (0, n)),   # task-vector bs
            ],
            out_specs=pl.BlockSpec((tm, tn), lambda m, n, k, tw: (m, n)),
            scratch_shapes=[pltpu.VMEM((tm, tn), jnp.float32)],
        ),
        compiler_params=pltpu.CompilerParams(
            dimension_semantics=("parallel", "parallel", "arbitrary")),
    )(task_wise_weight, x, w_merged, pre_b2, task_b)


# ---------------------------------------------------------------------------
# Wrapper: pad to tile multiples, merge once, then tiled matmul + bias.
# ---------------------------------------------------------------------------
@functools.partial(jax.jit, static_argnames=("tm", "tn", "tk"))
def task_wise_merged_linear(task_wise_weight, x, pre_w, pre_b, task_w, task_b,
                            *, tm=128, tn=128, tk=256):
    B, Din = x.shape
    Dout = pre_w.shape[0]

    # Clamp tiles to the (padded) problem size; keep (8, 128) alignment.
    tm = min(tm, _round_up(B, 8))
    tn = min(tn, _round_up(Dout, 128))
    tk = min(tk, _round_up(Din, 128))

    Mp = _round_up(B, tm)
    Np = _round_up(Dout, tn)
    Kp = _round_up(Din, tk)

    xp = jnp.pad(x, ((0, Mp - B), (0, Kp - Din)))
    pwp = jnp.pad(pre_w, ((0, Np - Dout), (0, Kp - Din)))
    pbp = jnp.pad(pre_b, (0, Np - Dout)).reshape(1, Np)
    twp = jnp.pad(task_w, ((0, 0), (0, Np - Dout), (0, Kp - Din)))
    tbp = jnp.pad(task_b, ((0, 0), (0, Np - Dout)))

    # merge_weights(): one pass over the (1+T) weight streams, written once to HBM.
    w_merged = _merge_weights(task_wise_weight, pwp, twp, tn=tn, tk=tk)
    # forward(): functional_call of the underlying Linear with the merged weights.
    y = _merged_matmul(task_wise_weight, xp, w_merged, pbp, tbp, tm=tm, tn=tn, tk=tk)
    return y[:B, :Dout]


if __name__ == "__main__":
    key = jax.random.PRNGKey(0)
    k1, k2, k3, k4, k5 = jax.random.split(key, 5)

    # Small, deliberately ragged shapes to exercise tiling + padding.
    B, Din, Dout, T = 96, 200, 320, 3

    x = jax.random.normal(k1, (B, Din), dtype=jnp.float32)
    pre_w = jax.random.normal(k2, (Dout, Din), dtype=jnp.float32) * 0.05
    pre_b = jax.random.normal(k3, (Dout,), dtype=jnp.float32) * 0.05
    task_w = jax.random.normal(k4, (T, Dout, Din), dtype=jnp.float32) * 0.02
    task_b = jax.random.normal(k5, (T, Dout), dtype=jnp.float32) * 0.02
    # Values outside [0, 1] exercise the clamp (clamp_weights=True).
    task_wise_weight = jnp.array([-0.5, 0.3, 1.7], dtype=jnp.float32)

    y = task_wise_merged_linear(task_wise_weight, x, pre_w, pre_b, task_w, task_b)
    y = jax.block_until_ready(y)

    # Pure-JAX reference (mirrors merge_weights + functional_call of nn.Linear).
    tw_c = jnp.clip(task_wise_weight, 0.0, 1.0)
    w_m = pre_w + jnp.einsum("t,toi->oi", tw_c, task_w)
    b_m = pre_b + jnp.einsum("t,to->o", tw_c, task_b)
    y_ref = x @ w_m.T + b_m

    assert y.shape == y_ref.shape, (y.shape, y_ref.shape)
    max_err = float(jnp.max(jnp.abs(y - y_ref)))
    assert jnp.allclose(y, y_ref, atol=1e-3, rtol=1e-3), max_err
    print("KERNEL_OK")
</pallas_src>

<mosaic_0001>
module attributes {stable_mosaic.version = 11 : i64} {
  func.func @merge_weight_kernel(%arg0: i32, %arg1: i32, %arg2: memref<3xf32, #tpu.memory_space<smem>>, %arg3: memref<128x256xf32, #tpu.memory_space<vmem>>, %arg4: memref<3x128x256xf32, #tpu.memory_space<vmem>>, %arg5: memref<128x256xf32, #tpu.memory_space<vmem>>) attributes {dimension_semantics = [#tpu.dimension_semantics<parallel>, #tpu.dimension_semantics<parallel>], iteration_bounds = array<i64: 3, 1>, scalar_prefetch = 1 : i64, scratch_operands = 0 : i64, tpu.core_type = #tpu.core_type<tc>, window_params = [{transform_indices = @transform_0, window_bounds = array<i64: 128, 256>}, {transform_indices = @transform_1, window_bounds = array<i64: 3, 128, 256>}, {transform_indices = @transform_2, window_bounds = array<i64: 128, 256>}]} {
    %c0 = arith.constant 0 : index
    %c0_0 = arith.constant 0 : index
    %0 = vector.load %arg3[%c0, %c0_0] : memref<128x256xf32, #tpu.memory_space<vmem>>, vector<128x256xf32>
    %c0_1 = arith.constant 0 : index
    %c0_2 = arith.constant 0 : index
    %1 = vector.load %arg5[%c0_1, %c0_2] : memref<128x256xf32, #tpu.memory_space<vmem>>, vector<128x256xf32>
    tpu.vector_store %arg5[%c0_1, %c0_2], %0 {strides = array<i32>} : memref<128x256xf32, #tpu.memory_space<vmem>>, vector<128x256xf32>,
    %c0_3 = arith.constant 0 : index
    %2 = memref.load %arg2[%c0_3] : memref<3xf32, #tpu.memory_space<smem>>
    %cst = arith.constant 0.000000e+00 : f32
    %cst_4 = arith.constant 1.000000e+00 : f32
    %3 = arith.maximumf %cst, %2 : f32
    %4 = arith.minimumf %cst_4, %3 : f32
    %c0_5 = arith.constant 0 : index
    %c0_6 = arith.constant 0 : index
    %5 = vector.load %arg5[%c0_5, %c0_6] : memref<128x256xf32, #tpu.memory_space<vmem>>, vector<128x256xf32>
    %c0_7 = arith.constant 0 : index
    %c0_8 = arith.constant 0 : index
    %c0_9 = arith.constant 0 : index
    %6 = vector.load %arg4[%c0_7, %c0_8, %c0_9] : memref<3x128x256xf32, #tpu.memory_space<vmem>>, vector<1x128x256xf32>
    %7 = vector.shape_cast %6 : vector<1x128x256xf32> to vector<128x256xf32>
    %8 = vector.broadcast %4 : f32 to vector<128x256xf32>
    %9 = arith.mulf %8, %7 : vector<128x256xf32>
    %10 = arith.addf %5, %9 : vector<128x256xf32>
    %c0_10 = arith.constant 0 : index
    %c0_11 = arith.constant 0 : index
    %11 = vector.load %arg5[%c0_10, %c0_11] : memref<128x256xf32, #tpu.memory_space<vmem>>, vector<128x256xf32>
    tpu.vector_store %arg5[%c0_10, %c0_11], %10 {strides = array<i32>} : memref<128x256xf32, #tpu.memory_space<vmem>>, vector<128x256xf32>,
    %c1 = arith.constant 1 : index
    %12 = memref.load %arg2[%c1] : memref<3xf32, #tpu.memory_space<smem>>
    %cst_12 = arith.constant 0.000000e+00 : f32
    %cst_13 = arith.constant 1.000000e+00 : f32
    %13 = arith.maximumf %cst_12, %12 : f32
    %14 = arith.minimumf %cst_13, %13 : f32
    %c0_14 = arith.constant 0 : index
    %c0_15 = arith.constant 0 : index
    %15 = vector.load %arg5[%c0_14, %c0_15] : memref<128x256xf32, #tpu.memory_space<vmem>>, vector<128x256xf32>
    %c1_16 = arith.constant 1 : index
    %c0_17 = arith.constant 0 : index
    %c0_18 = arith.constant 0 : index
    %16 = vector.load %arg4[%c1_16, %c0_17, %c0_18] : memref<3x128x256xf32, #tpu.memory_space<vmem>>, vector<1x128x256xf32>
    %17 = vector.shape_cast %16 : vector<1x128x256xf32> to vector<128x256xf32>
    %18 = vector.broadcast %14 : f32 to vector<128x256xf32>
    %19 = arith.mulf %18, %17 : vector<128x256xf32>
    %20 = arith.addf %15, %19 : vector<128x256xf32>
    %c0_19 = arith.constant 0 : index
    %c0_20 = arith.constant 0 : index
    %21 = vector.load %arg5[%c0_19, %c0_20] : memref<128x256xf32, #tpu.memory_space<vmem>>, vector<128x256xf32>
    tpu.vector_store %arg5[%c0_19, %c0_20], %20 {strides = array<i32>} : memref<128x256xf32, #tpu.memory_space<vmem>>, vector<128x256xf32>,
    %c2 = arith.constant 2 : index
    %22 = memref.load %arg2[%c2] : memref<3xf32, #tpu.memory_space<smem>>
    %cst_21 = arith.constant 0.000000e+00 : f32
    %cst_22 = arith.constant 1.000000e+00 : f32
    %23 = arith.maximumf %cst_21, %22 : f32
    %24 = arith.minimumf %cst_22, %23 : f32
    %c0_23 = arith.constant 0 : index
    %c0_24 = arith.constant 0 : index
    %25 = vector.load %arg5[%c0_23, %c0_24] : memref<128x256xf32, #tpu.memory_space<vmem>>, vector<128x256xf32>
    %c2_25 = arith.constant 2 : index
    %c0_26 = arith.constant 0 : index
    %c0_27 = arith.constant 0 : index
    %26 = vector.load %arg4[%c2_25, %c0_26, %c0_27] : memref<3x128x256xf32, #tpu.memory_space<vmem>>, vector<1x128x256xf32>
    %27 = vector.shape_cast %26 : vector<1x128x256xf32> to vector<128x256xf32>
    %28 = vector.broadcast %24 : f32 to vector<128x256xf32>
    %29 = arith.mulf %28, %27 : vector<128x256xf32>
    %30 = arith.addf %25, %29 : vector<128x256xf32>
    %c0_28 = arith.constant 0 : index
    %c0_29 = arith.constant 0 : index
    %31 = vector.load %arg5[%c0_28, %c0_29] : memref<128x256xf32, #tpu.memory_space<vmem>>, vector<128x256xf32>
    tpu.vector_store %arg5[%c0_28, %c0_29], %30 {strides = array<i32>} : memref<128x256xf32, #tpu.memory_space<vmem>>, vector<128x256xf32>,
    return
  }
  func.func @transform_0(%arg0: i32, %arg1: i32, %arg2: memref<3xf32, #tpu.memory_space<smem>>) -> (i32, i32) {
    %c0_i32 = arith.constant 0 : i32
    return %arg0, %arg1 : i32, i32
  }
  func.func @transform_1(%arg0: i32, %arg1: i32, %arg2: memref<3xf32, #tpu.memory_space<smem>>) -> (i32, i32, i32) {
    %c0_i32 = arith.constant 0 : i32
    %c0_i32_0 = arith.constant 0 : i32
    return %c0_i32, %arg0, %arg1 : i32, i32, i32
  }
  func.func @transform_2(%arg0: i32, %arg1: i32, %arg2: memref<3xf32, #tpu.memory_space<smem>>) -> (i32, i32) {
    %c0_i32 = arith.constant 0 : i32
    return %arg0, %arg1 : i32, i32
  }
}

module attributes {stable_mosaic.version = 11 : i64} {
  func.func @merged_matmul_kernel(%arg0: i32, %arg1: i32, %arg2: i32, %arg3: memref<3xf32, #tpu.memory_space<smem>>, %arg4: memref<96x256xf32, #tpu.memory_space<vmem>>, %arg5: memref<128x256xf32, #tpu.memory_space<vmem>>, %arg6: memref<1x128xf32, #tpu.memory_space<vmem>>, %arg7: memref<3x128xf32, #tpu.memory_space<vmem>>, %arg8: memref<96x128xf32, #tpu.memory_space<vmem>>, %arg9: memref<96x128xf32, #tpu.memory_space<vmem>>) attributes {dimension_semantics = [#tpu.dimension_semantics<parallel>, #tpu.dimension_semantics<parallel>, #tpu.dimension_semantics<arbitrary>], iteration_bounds = array<i64: 1, 3, 1>, scalar_prefetch = 1 : i64, scratch_operands = 1 : i64, tpu.core_type = #tpu.core_type<tc>, window_params = [{transform_indices = @transform_0, window_bounds = array<i64: 96, 256>}, {transform_indices = @transform_1, window_bounds = array<i64: 128, 256>}, {transform_indices = @transform_2, window_bounds = array<i64: 1, 128>}, {transform_indices = @transform_3, window_bounds = array<i64: 3, 128>}, {transform_indices = @transform_4, window_bounds = array<i64: 96, 128>}]} {
    %c0_i32 = arith.constant 0 : i32
    %0 = arith.cmpi eq, %arg2, %c0_i32 : i32
    %1 = arith.extui %0 : i1 to i32
    %c0_i32_0 = arith.constant 0 : i32
    %2 = arith.cmpi ne, %1, %c0_i32_0 : i32
    scf.if %2 {
      %cst_10 = arith.constant 0.000000e+00 : f32
      %12 = vector.broadcast %cst_10 : f32 to vector<96x128xf32>
      %c0_11 = arith.constant 0 : index
      %c0_12 = arith.constant 0 : index
      %13 = vector.load %arg9[%c0_11, %c0_12] : memref<96x128xf32, #tpu.memory_space<vmem>>, vector<96x128xf32>
      tpu.vector_store %arg9[%c0_11, %c0_12], %12 {strides = array<i32>} : memref<96x128xf32, #tpu.memory_space<vmem>>, vector<96x128xf32>,
    } else {
    }
    %c0 = arith.constant 0 : index
    %c0_1 = arith.constant 0 : index
    %3 = vector.load %arg9[%c0, %c0_1] : memref<96x128xf32, #tpu.memory_space<vmem>>, vector<96x128xf32>
    %c0_2 = arith.constant 0 : index
    %c0_3 = arith.constant 0 : index
    %4 = vector.load %arg4[%c0_2, %c0_3] : memref<96x256xf32, #tpu.memory_space<vmem>>, vector<96x256xf32>
    %c0_4 = arith.constant 0 : index
    %c0_5 = arith.constant 0 : index
    %5 = vector.load %arg5[%c0_4, %c0_5] : memref<128x256xf32, #tpu.memory_space<vmem>>, vector<128x256xf32>
    %cst = arith.constant dense<0.000000e+00> : vector<96x128xf32>
    %6 = tpu.matmul %4, %5, %cst {dimension_numbers = #tpu.dot_dimension_numbers<[1], [1], [0], [0], [0, 0, 1, 0], [], []>} : vector<96x256xf32>, vector<128x256xf32>, vector<96x128xf32> -> vector<96x128xf32>
    %7 = arith.addf %3, %6 : vector<96x128xf32>
    %c0_6 = arith.constant 0 : index
    %c0_7 = arith.constant 0 : index
    %8 = vector.load %arg9[%c0_6, %c0_7] : memref<96x128xf32, #tpu.memory_space<vmem>>, vector<96x128xf32>
    tpu.vector_store %arg9[%c0_6, %c0_7], %7 {strides = array<i32>} : memref<96x128xf32, #tpu.memory_space<vmem>>, vector<96x128xf32>,
    %c0_i32_8 = arith.constant 0 : i32
    %9 = arith.cmpi eq, %arg2, %c0_i32_8 : i32
    %10 = arith.extui %9 : i1 to i32
    %c0_i32_9 = arith.constant 0 : i32
    %11 = arith.cmpi ne, %10, %c0_i32_9 : i32
    scf.if %11 {
      %c0_10 = arith.constant 0 : index
      %c0_11 = arith.constant 0 : index
      %12 = vector.load %arg6[%c0_10, %c0_11] : memref<1x128xf32, #tpu.memory_space<vmem>>, vector<1x128xf32>
      %c0_12 = arith.constant 0 : index
      %13 = memref.load %arg3[%c0_12] : memref<3xf32, #tpu.memory_space<smem>>
      %cst_13 = arith.constant 0.000000e+00 : f32
      %cst_14 = arith.constant 1.000000e+00 : f32
      %14 = arith.maximumf %cst_13, %13 : f32
      %15 = arith.minimumf %cst_14, %14 : f32
      %c0_15 = arith.constant 0 : index
      %c0_16 = arith.constant 0 : index
      %16 = vector.load %arg7[%c0_15, %c0_16] : memref<3x128xf32, #tpu.memory_space<vmem>>, vector<1x128xf32>
      %17 = vector.broadcast %15 : f32 to vector<1x128xf32>
      %18 = arith.mulf %17, %16 : vector<1x128xf32>
      %19 = arith.addf %12, %18 : vector<1x128xf32>
      %c1 = arith.constant 1 : index
      %20 = memref.load %arg3[%c1] : memref<3xf32, #tpu.memory_space<smem>>
      %cst_17 = arith.constant 0.000000e+00 : f32
      %cst_18 = arith.constant 1.000000e+00 : f32
      %21 = arith.maximumf %cst_17, %20 : f32
      %22 = arith.minimumf %cst_18, %21 : f32
      %c1_19 = arith.constant 1 : index
      %c0_20 = arith.constant 0 : index
      %23 = vector.load %arg7[%c1_19, %c0_20] : memref<3x128xf32, #tpu.memory_space<vmem>>, vector<1x128xf32>
      %24 = vector.broadcast %22 : f32 to vector<1x128xf32>
      %25 = arith.mulf %24, %23 : vector<1x128xf32>
      %26 = arith.addf %19, %25 : vector<1x128xf32>
      %c2 = arith.constant 2 : index
      %27 = memref.load %arg3[%c2] : memref<3xf32, #tpu.memory_space<smem>>
      %cst_21 = arith.constant 0.000000e+00 : f32
      %cst_22 = arith.constant 1.000000e+00 : f32
      %28 = arith.maximumf %cst_21, %27 : f32
      %29 = arith.minimumf %cst_22, %28 : f32
      %c2_23 = arith.constant 2 : index
      %c0_24 = arith.constant 0 : index
      %30 = vector.load %arg7[%c2_23, %c0_24] : memref<3x128xf32, #tpu.memory_space<vmem>>, vector<1x128xf32>
      %31 = vector.broadcast %29 : f32 to vector<1x128xf32>
      %32 = arith.mulf %31, %30 : vector<1x128xf32>
      %33 = arith.addf %26, %32 : vector<1x128xf32>
      %c0_25 = arith.constant 0 : index
      %c0_26 = arith.constant 0 : index
      %34 = vector.load %arg9[%c0_25, %c0_26] : memref<96x128xf32, #tpu.memory_space<vmem>>, vector<96x128xf32>
      %35 = vector.broadcast %33 : vector<1x128xf32> to vector<96x128xf32>
      %36 = arith.addf %34, %35 : vector<96x128xf32>
      %c0_27 = arith.constant 0 : index
      %c0_28 = arith.constant 0 : index
      %37 = vector.load %arg8[%c0_27, %c0_28] : memref<96x128xf32, #tpu.memory_space<vmem>>, vector<96x128xf32>
      tpu.vector_store %arg8[%c0_27, %c0_28], %36 {strides = array<i32>} : memref<96x128xf32, #tpu.memory_space<vmem>>, vector<96x128xf32>,
    } else {
    }
    return
  }
  func.func @transform_0(%arg0: i32, %arg1: i32, %arg2: i32, %arg3: memref<3xf32, #tpu.memory_space<smem>>) -> (i32, i32) {
    %c0_i32 = arith.constant 0 : i32
    return %arg0, %arg2 : i32, i32
  }
  func.func @transform_1(%arg0: i32, %arg1: i32, %arg2: i32, %arg3: memref<3xf32, #tpu.memory_space<smem>>) -> (i32, i32) {
    %c0_i32 = arith.constant 0 : i32
    return %arg1, %arg2 : i32, i32
  }
  func.func @transform_2(%arg0: i32, %arg1: i32, %arg2: i32, %arg3: memref<3xf32, #tpu.memory_space<smem>>) -> (i32, i32) {
    %c0_i32 = arith.constant 0 : i32
    %c0_i32_0 = arith.constant 0 : i32
    return %c0_i32, %arg1 : i32, i32
  }
  func.func @transform_3(%arg0: i32, %arg1: i32, %arg2: i32, %arg3: memref<3xf32, #tpu.memory_space<smem>>) -> (i32, i32) {
    %c0_i32 = arith.constant 0 : i32
    %c0_i32_0 = arith.constant 0 : i32
    return %c0_i32, %arg1 : i32, i32
  }
  func.func @transform_4(%arg0: i32, %arg1: i32, %arg2: i32, %arg3: memref<3xf32, #tpu.memory_space<smem>>) -> (i32, i32) {
    %c0_i32 = arith.constant 0 : i32
    return %arg0, %arg1 : i32, i32
  }
}

</mosaic_0001>

<llo_original>
// kernel: task_wise_merged_linear.3
$region0: #{task_wise_merged_linear.3}
  #allocation0 [shape = 'u32[]', space=smem, size = 0x4, offset = 0x4, fixed_abs, tag = 'smem constant byte address 0x4 - core index']
  #allocation1 [shape = 'u32[144,128]{1,0:T(1,128)}', space=vmem, size = 0x12000, scoped, tag = 'internal scratch']
  #allocation2 [shape = 'f32[96,128]{1,0:T(8,128)}', space=vmem, size = 0xc000, scoped, tag = 'scratch operand']
  #allocation3 [shape = 's32[1]{0}', space=sflag, size = 0x4, scoped, tag = 'scoped memory for task_wise_merged_linear.3']
  #allocation4 [shape = 'u8[512]{0}', space=smem, size = 0x200, scoped, tag = 'prefetched SMEM operand 0']
  %s0 = inlined_call_operand.vmem [shape: f32[3], index: 0, kind: input, shape index: {}]
  %s1 = inlined_call_operand.vmem [shape: f32[96,256], index: 1, kind: input, shape index: {}]
  %s2 = inlined_call_operand.vmem [shape: f32[384,256], index: 2, kind: input, shape index: {}]
  %s3 = inlined_call_operand.vmem [shape: f32[1,384], index: 3, kind: input, shape index: {}]
  %s4 = inlined_call_operand.vmem [shape: f32[3,384], index: 4, kind: input, shape index: {}]
  %s5 = inlined_call_operand.hbm [shape: f32[96,384], index: 5, kind: output, shape index: {}]
  %s6 = sld [smem:[#allocation0]]
  $region57: #{task_wise_merged_linear.3} parent=0
    _
  %s8 = ssub.s32 1, %s6
  %s9 = scalar_select 0, %s8, %s6
  %s10 = sshll.u32 %s0, 4
  %s11 = int_to_ptr.vmem [resolvable:$true] %s10
  %13 = dma.vmem_to_smem %s11, 16, [#allocation4], [#allocation3]
  %14 = dma.done [#allocation3], 16
  %15 = sfence
  $region1: #{task_wise_merged_linear.3} parent=0
    #allocation5 [shape = 'u8[98304]{0}', space=vmem, size = 0x18000, scoped, tag = 'output window, operand 0']
    #allocation6 [shape = 's32[2]{0}', space=sflag, size = 0x8, scoped, tag = 'scoped memory for task_wise_merged_linear.3']
    %16 = vsyncpa [#allocation6], 0
    %s17 = scalar_lea.sflag [#allocation6], 1
    %18 = vsyncpa %s17, 0
    loop: start=0, step=1, limit=5
    $region2: #{task_wise_merged_linear.3} parent=1 // loop_pre_header
      _
    $region3: #{task_wise_merged_linear.3} parent=1 // loop_header
      %s20 = sphi 0, %s24
      %p21 = scmp.ge.s32.totalorder %s20, 5
      %s27 = sphi 0, %s46
      %s28 = sphi 0, %s42
      %s29 = sphi 0, %s38
      %s30 = sphi 0, %s27
      %s31 = sphi 0, %s28
      %s32 = sphi 0, %s29
      %s33 = sphi 0, %s30
      %s34 = sphi 0, %s31
      %s35 = sphi 0, %s32
      %s51 = sphi 0, %s53
      %s54 = sphi 0, %s51
      %s55 = sphi 0, %s54
      %s71 = sphi 0, %s55
      %s79 = sphi 0, %s81
      %s82 = sphi 0, %s79
      %s83 = sphi 0, %s82
      %s99 = sphi 0, %s83
      %s105 = sphi 0, %s107
      %s108 = sphi 0, %s105
      %s109 = sphi 0, %s108
      %s125 = sphi 0, %s109
      %s131 = sphi 0, %s133
      %s134 = sphi 0, %s131
      %s135 = sphi 0, %s134
      %s151 = sphi 0, %s135
      %s159 = sphi 0, %s161
      %s162 = sphi 0, %s159
      %s163 = sphi 0, %s162
      %s179 = sphi 0, %s163
    $region4: #{task_wise_merged_linear.3} parent=1 // loop_header_branch
      %23 = sbr.rel (%p21) target = $region8
    $region5: #{task_wise_merged_linear.3} parent=1 // loop_body
      %s25 = ssub.s32 %s20, 1
      %s26 = ssub.s32 %s20, 2
      %s36 = sadd.s32 1, %s29
      %p37 = scmp.ge.s32.totalorder %s36, 1
      %s38 = scalar_select %p37, 0, %s36
      %s39 = sadd.s32 1, %s28
      %s40 = scalar_select %p37, %s39, %s28
      %p41 = scmp.ge.s32.totalorder %s40, 3
      %s42 = scalar_select %p41, 0, %s40
      %s43 = sadd.s32 1, %s27
      %s44 = scalar_select %p41, %s43, %s27
      %p45 = scmp.ge.s32.totalorder %s44, 1
      %s46 = scalar_select %p45, 0, %s44
      %s47 = ssub.s32 %s27, %s46
      %s48 = ssub.s32 %s29, %s38
      %s49 = sor.u32 %s47, %s48
      %p50 = scmp.eq.s32.totalorder %s49, 0
      %s52 = sadd.s32 %s51, 1
      %s53 = scalar_select %p50, %s51, %s52
      %p56 = pneg %p50
      %p57 = scmp.eq.s32.totalorder %s20, 2
      %p58 = por %p56, %p57
      %p59 = scmp.ne.s32.totalorder %s51, %s54
      %p60 = scmp.eq.s32.totalorder %s20, 0
      %p61 = por %p59, %p60
      %p62 = scmp.ne.s32.totalorder %s51, %s54
      %p63 = scmp.eq.s32.totalorder %s25, 2
      %p64 = por %p62, %p63
      %p65 = scmp.ne.s32.totalorder %s54, %s55
      %p66 = scmp.eq.s32.totalorder %s25, 0
      %p67 = por %p65, %p66
      %p68 = scmp.ne.s32.totalorder %s54, %s55
      %p69 = scmp.eq.s32.totalorder %s26, 2
      %p70 = por %p68, %p69
      %p72 = scmp.ne.s32.totalorder %s55, %s71
      %p73 = scmp.eq.s32.totalorder %s26, 0
      %p74 = por %p72, %p73
      %s75 = ssub.s32 %s28, %s42
      %s76 = ssub.s32 %s29, %s38
      %s77 = sor.u32 %s75, %s76
      %p78 = scmp.eq.s32.totalorder %s77, 0
      %s80 = sadd.s32 %s79, 1
      %s81 = scalar_select %p78, %s79, %s80
      %p84 = pneg %p78
      %p85 = scmp.eq.s32.totalorder %s20, 2
      %p86 = por %p84, %p85
      %p87 = scmp.ne.s32.totalorder %s79, %s82
      %p88 = scmp.eq.s32.totalorder %s20, 0
      %p89 = por %p87, %p88
      %p90 = scmp.ne.s32.totalorder %s79, %s82
      %p91 = scmp.eq.s32.totalorder %s25, 2
      %p92 = por %p90, %p91
      %p93 = scmp.ne.s32.totalorder %s82, %s83
      %p94 = scmp.eq.s32.totalorder %s25, 0
      %p95 = por %p93, %p94
      %p96 = scmp.ne.s32.totalorder %s82, %s83
      %p97 = scmp.eq.s32.totalorder %s26, 2
      %p98 = por %p96, %p97
      %p100 = scmp.ne.s32.totalorder %s83, %s99
      %p101 = scmp.eq.s32.totalorder %s26, 0
      %p102 = por %p100, %p101
      %s103 = ssub.s32 %s28, %s42
      %p104 = scmp.eq.s32.totalorder %s103, 0
      %s106 = sadd.s32 %s105, 1
      %s107 = scalar_select %p104, %s105, %s106
      %p110 = pneg %p104
      %p111 = scmp.eq.s32.totalorder %s20, 2
      %p112 = por %p110, %p111
      %p113 = scmp.ne.s32.totalorder %s105, %s108
      %p114 = scmp.eq.s32.totalorder %s20, 0
      %p115 = por %p113, %p114
      %p116 = scmp.ne.s32.totalorder %s105, %s108
      %p117 = scmp.eq.s32.totalorder %s25, 2
      %p118 = por %p116, %p117
      %p119 = scmp.ne.s32.totalorder %s108, %s109
      %p120 = scmp.eq.s32.totalorder %s25, 0
      %p121 = por %p119, %p120
      %p122 = scmp.ne.s32.totalorder %s108, %s109
      %p123 = scmp.eq.s32.totalorder %s26, 2
      %p124 = por %p122, %p123
      %p126 = scmp.ne.s32.totalorder %s109, %s125
      %p127 = scmp.eq.s32.totalorder %s26, 0
      %p128 = por %p126, %p127
      %s129 = ssub.s32 %s28, %s42
      %p130 = scmp.eq.s32.totalorder %s129, 0
      %s132 = sadd.s32 %s131, 1
      %s133 = scalar_select %p130, %s131, %s132
      %p136 = pneg %p130
      %p137 = scmp.eq.s32.totalorder %s20, 2
      %p138 = por %p136, %p137
      %p139 = scmp.ne.s32.totalorder %s131, %s134
      %p140 = scmp.eq.s32.totalorder %s20, 0
      %p141 = por %p139, %p140
      %p142 = scmp.ne.s32.totalorder %s131, %s134
      %p143 = scmp.eq.s32.totalorder %s25, 2
      %p144 = por %p142, %p143
      %p145 = scmp.ne.s32.totalorder %s134, %s135
      %p146 = scmp.eq.s32.totalorder %s25, 0
      %p147 = por %p145, %p146
      %p148 = scmp.ne.s32.totalorder %s134, %s135
      %p149 = scmp.eq.s32.totalorder %s26, 2
      %p150 = por %p148, %p149
      %p152 = scmp.ne.s32.totalorder %s135, %s151
      %p153 = scmp.eq.s32.totalorder %s26, 0
      %p154 = por %p152, %p153
      %s155 = ssub.s32 %s27, %s46
      %s156 = ssub.s32 %s28, %s42
      %s157 = sor.u32 %s155, %s156
      %p158 = scmp.eq.s32.totalorder %s157, 0
      %s160 = sadd.s32 %s159, 1
      %s161 = scalar_select %p158, %s159, %s160
      %p164 = pneg %p158
      %p165 = scmp.eq.s32.totalorder %s20, 2
      %p166 = por %p164, %p165
      %p167 = scmp.ne.s32.totalorder %s159, %s162
      %p168 = scmp.eq.s32.totalorder %s20, 0
      %p169 = por %p167, %p168
      %p170 = scmp.ne.s32.totalorder %s159, %s162
      %p171 = scmp.eq.s32.totalorder %s25, 2
      %p172 = por %p170, %p171
      %p173 = scmp.ne.s32.totalorder %s162, %s163
      %p174 = scmp.eq.s32.totalorder %s25, 0
      %p175 = por %p173, %p174
      %p176 = scmp.ne.s32.totalorder %s162, %s163
      %p177 = scmp.eq.s32.totalorder %s26, 2
      %p178 = por %p176, %p177
      %p180 = scmp.ne.s32.totalorder %s163, %s179
      %p181 = scmp.eq.s32.totalorder %s26, 0
      %p182 = por %p180, %p181
      %p183 = scmp.le.s32.totalorder 1, %s20
      %p184 = scmp.lt.s32.totalorder %s20, 4
      %p185 = pnand %p183, %p184
      %p186 = pneg %p185
      // Predicated region
      $region9: #{task_wise_merged_linear.3} parent=5 // pred_check
        _
      $region10: #{task_wise_merged_linear.3} parent=5 // pred_check_branch
        %188 = sbr.rel (%p185) target = $region12
      $region11: #{task_wise_merged_linear.3} parent=5 // pred_region
        %s189 = ssub.s32 %s20, 1
        // Predicated region
        $region13: #{task_wise_merged_linear.3} parent=11 // pred_check
          %p190 = pneg %p67
        $region14: #{task_wise_merged_linear.3} parent=11 // pred_check_branch
          %192 = sbr.rel (%p190) target = $region16
        $region15: #{task_wise_merged_linear.3} parent=11 // pred_region
          %s193 = smul.u32 12, %s30
          %s194 = smul.u32 2, %s32
          %p195 = scmp.lt.s32.totalorder %s193, 11
          %s196 = scalar_select %p195, %s193, 11
          %p197 = scmp.lt.s32.totalorder %s194, 1
          %s198 = scalar_select %p197, %s194, 1
          %s199 = smul.addr %s196, 2
          %s200 = sadd.s32 %s198, %s199
          %s201 = smul.addr %s200, 8
          %s202 = scalar_lea.vmem %s1, %s201
          %s203 = smul.u32 12, %s30
          %s204 = smul.u32 2, %s32
        $region16: #{task_wise_merged_linear.3} parent=11 // pred_fallthru
          _
      $region12: #{task_wise_merged_linear.3} parent=5 // pred_fallthru
        _
      %p205 = scmp.lt.s32.totalorder %s20, 3
      // Predicated region
      $region17: #{task_wise_merged_linear.3} parent=5 // pred_check
        %p206 = pneg %p205
      $region18: #{task_wise_merged_linear.3} parent=5 // pred_check_branch
        %208 = sbr.rel (%p206) target = $region20
      $region19: #{task_wise_merged_linear.3} parent=5 // pred_region
        // Predicated region
        $region21: #{task_wise_merged_linear.3} parent=19 // pred_check
          %p209 = pneg %p89
        $region22: #{task_wise_merged_linear.3} parent=19 // pred_check_branch
          %211 = sbr.rel (%p209) target = $region24
        $region23: #{task_wise_merged_linear.3} parent=19 // pred_region
          %s212 = smul.u32 16, %s28
          %s213 = smul.u32 2, %s29
          %p214 = scmp.lt.s32.totalorder %s212, 47
          %s215 = scalar_select %p214, %s212, 47
          %p216 = scmp.lt.s32.totalorder %s213, 1
          %s217 = scalar_select %p216, %s213, 1
          %s218 = smul.addr %s215, 2
          %s219 = sadd.s32 %s217, %s218
          %s220 = smul.addr %s219, 8
          %s221 = scalar_lea.vmem %s2, %s220
          %s222 = smul.u32 16, %s28
          %s223 = smul.u32 2, %s29
        $region24: #{task_wise_merged_linear.3} parent=19 // pred_fallthru
          _
        // Predicated region
        $region25: #{task_wise_merged_linear.3} parent=19 // pred_check
          %p224 = pneg %p115
        $region26: #{task_wise_merged_linear.3} parent=19 // pred_check_branch
          %226 = sbr.rel (%p224) target = $region28
        $region27: #{task_wise_merged_linear.3} parent=19 // pred_region
          %p227 = scmp.lt.s32.totalorder %s28, 2
          %s228 = scalar_select %p227, %s28, 2
          %s229 = scalar_lea.vmem %s3, %s228
        $region28: #{task_wise_merged_linear.3} parent=19 // pred_fallthru
          _
        // Predicated region
        $region29: #{task_wise_merged_linear.3} parent=19 // pred_check
          %p230 = pneg %p141
        $region30: #{task_wise_merged_linear.3} parent=19 // pred_check_branch
          %232 = sbr.rel (%p230) target = $region32
        $region31: #{task_wise_merged_linear.3} parent=19 // pred_region
          %p233 = scmp.lt.s32.totalorder %s28, 2
          %s234 = scalar_select %p233, %s28, 2
          %s235 = smul.addr %s234, 4
          %s236 = scalar_lea.vmem %s4, %s235
        $region32: #{task_wise_merged_linear.3} parent=19 // pred_fallthru
          _
      $region20: #{task_wise_merged_linear.3} parent=5 // pred_fallthru
        _
      %p237 = scmp.le.s32.totalorder 1, %s20
      %p238 = scmp.lt.s32.totalorder %s20, 4
      %p239 = pnand %p237, %p238
      %p240 = pneg %p239
      // Predicated region
      $region33: #{task_wise_merged_linear.3} parent=5 // pred_check
        _
      $region34: #{task_wise_merged_linear.3} parent=5 // pred_check_branch
        %242 = sbr.rel (%p239) target = $region36
      $region35: #{task_wise_merged_linear.3} parent=5 // pred_region
        %s243 = ssub.s32 %s20, 1
        %s244 = smul.u32 12, %s30
        %s245 = smul.u32 2, %s32
        %p246 = scmp.lt.s32.totalorder %s244, 11
        %s247 = scalar_select %p246, %s244, 11
        %p248 = scmp.lt.s32.totalorder %s245, 1
        %s249 = scalar_select %p248, %s245, 1
        %s250 = smul.addr %s247, 2
        %s251 = sadd.s32 %s249, %s250
        %s252 = smul.addr %s251, 8
        %s253 = scalar_lea.vmem %s1, %s252
        %p254 = pneg %p67
        %p255 = pneg %p64
        %s256 = smul.u32 16, %s31
        %s257 = smul.u32 2, %s32
        %p258 = scmp.lt.s32.totalorder %s256, 47
        %s259 = scalar_select %p258, %s256, 47
        %p260 = scmp.lt.s32.totalorder %s257, 1
        %s261 = scalar_select %p260, %s257, 1
        %s262 = smul.addr %s259, 2
        %s263 = sadd.s32 %s261, %s262
        %s264 = smul.addr %s263, 8
        %s265 = scalar_lea.vmem %s2, %s264
        %p266 = pneg %p95
        %p267 = pneg %p92
        %p268 = scmp.lt.s32.totalorder %s31, 2
        %s269 = scalar_select %p268, %s31, 2
        %s270 = scalar_lea.vmem %s3, %s269
        %p271 = pneg %p121
        %p272 = pneg %p118
        %p273 = scmp.lt.s32.totalorder %s31, 2
        %s274 = scalar_select %p273, %s31, 2
        %s275 = smul.addr %s274, 4
        %s276 = scalar_lea.vmem %s4, %s275
        %p277 = pneg %p147
        %p278 = pneg %p144
        %p279 = pneg %p175
        %p280 = pneg %p172
        %s281 = sand.u32 %s162, 1
        %s282 = scalar_lea.sflag [#allocation6], %s281
        %s283 = sand.u32 %s162, 1
        %s284 = smul.addr %s283, 96
        %s285 = scalar_lea.vmem [#allocation5], %s284
        %s286 = smul.u32 12, %s30
        %s287 = smul.u32 2, %s32
        %p288 = scmp.lt.s32.totalorder %s286, 11
        %s289 = scalar_select %p288, %s286, 11
        %p290 = scmp.lt.s32.totalorder %s287, 1
        %s291 = scalar_select %p290, %s287, 1
        %s292 = smul.addr %s289, 2
        %s293 = sadd.s32 %s291, %s292
        %s294 = smul.addr %s293, 8
        %s295 = scalar_lea.vmem %s1, %s294
        %s296 = smul.u32 12, %s30
        %s297 = smul.u32 2, %s32
        %s298 = smul.u32 16, %s31
        %s299 = smul.u32 2, %s32
        %p300 = scmp.lt.s32.totalorder %s298, 47
        %s301 = scalar_select %p300, %s298, 47
        %p302 = scmp.lt.s32.totalorder %s299, 1
        %s303 = scalar_select %p302, %s299, 1
        %s304 = smul.addr %s301, 2
        %s305 = sadd.s32 %s303, %s304
        %s306 = smul.addr %s305, 8
        %s307 = scalar_lea.vmem %s2, %s306
        %s308 = smul.u32 16, %s31
        %s309 = smul.u32 2, %s32
        %p310 = scmp.lt.s32.totalorder %s31, 2
        %s311 = scalar_select %p310, %s31, 2
        %s312 = scalar_lea.vmem %s3, %s311
        %p313 = scmp.lt.s32.totalorder %s31, 2
        %s314 = scalar_select %p313, %s31, 2
        %s315 = smul.addr %s314, 4
        %s316 = scalar_lea.vmem %s4, %s315
        %s317 = smul.u32 12, %s30
        %p318 = scmp.eq.s32.totalorder %s32, 0
        // Predicated region
        $region37: #{task_wise_merged_linear.3} parent=35 // pred_check
          %p319 = pneg %p318
        $region38: #{task_wise_merged_linear.3} parent=35 // pred_check_branch
          %321 = sbr.rel (%p319) target = $region40
        $region39: #{task_wise_merged_linear.3} parent=35 // pred_region
          %322 = vst [vmem:[#allocation2] sm:$0xff] 0.0
          %323 = vst [vmem:[#allocation2 + $0x8] sm:$0xff] 0.0
          %324 = vst [vmem:[#allocation2 + $0x10] sm:$0xff] 0.0
          %325 = vst [vmem:[#allocation2 + $0x18] sm:$0xff] 0.0
          %326 = vst [vmem:[#allocation2 + $0x20] sm:$0xff] 0.0
          %327 = vst [vmem:[#allocation2 + $0x28] sm:$0xff] 0.0
          %328 = vst [vmem:[#allocation2 + $0x30] sm:$0xff] 0.0
          %329 = vst [vmem:[#allocation2 + $0x38] sm:$0xff] 0.0
          %330 = vst [vmem:[#allocation2 + $0x40] sm:$0xff] 0.0
          %331 = vst [vmem:[#allocation2 + $0x48] sm:$0xff] 0.0
          %332 = vst [vmem:[#allocation2 + $0x50] sm:$0xff] 0.0
          %333 = vst [vmem:[#allocation2 + $0x58] sm:$0xff] 0.0
        $region40: #{task_wise_merged_linear.3} parent=35 // pred_fallthru
          _
        %v334 = vld [vmem:[#allocation2] sm:$0xff]
        %v335 = vld [vmem:[#allocation2 + $0x8] sm:$0xff]
        %v336 = vld [vmem:[#allocation2 + $0x10] sm:$0xff]
        %v337 = vld [vmem:[#allocation2 + $0x18] sm:$0xff]
        %v338 = vld [vmem:[#allocation2 + $0x20] sm:$0xff]
        %v339 = vld [vmem:[#allocation2 + $0x28] sm:$0xff]
        %v340 = vld [vmem:[#allocation2 + $0x30] sm:$0xff]
        %v341 = vld [vmem:[#allocation2 + $0x38] sm:$0xff]
        %v342 = vld [vmem:[#allocation2 + $0x40] sm:$0xff]
        %v343 = vld [vmem:[#allocation2 + $0x48] sm:$0xff]
        %v344 = vld [vmem:[#allocation2 + $0x50] sm:$0xff]
        %v345 = vld [vmem:[#allocation2 + $0x58] sm:$0xff]
        %v346 = vld [vmem:[%s295] sm:$0xff]
        %v347 = vld [vmem:[%s295 + $0x8] sm:$0xff]
        %v348 = vld [vmem:[%s295 + $0x10] sm:$0xff]
        %v349 = vld [vmem:[%s295 + $0x18] sm:$0xff]
        %v350 = vld [vmem:[%s295 + $0x20] sm:$0xff]
        %v351 = vld [vmem:[%s295 + $0x28] sm:$0xff]
        %v352 = vld [vmem:[%s295 + $0x30] sm:$0xff]
        %v353 = vld [vmem:[%s295 + $0x38] sm:$0xff]
        %v354 = vld [vmem:[%s295 + $0x40] sm:$0xff]
        %v355 = vld [vmem:[%s295 + $0x48] sm:$0xff]
        %v356 = vld [vmem:[%s295 + $0x50] sm:$0xff]
        %v357 = vld [vmem:[%s295 + $0x58] sm:$0xff]
        %v358 = vld [vmem:[%s295 + $0x60] sm:$0xff]
        %v359 = vld [vmem:[%s295 + $0x68] sm:$0xff]
        %v360 = vld [vmem:[%s295 + $0x70] sm:$0xff]
        %v361 = vld [vmem:[%s295 + $0x78] sm:$0xff]
        %v362 = vld [vmem:[%s295 + $0x80] sm:$0xff]
        %v363 = vld [vmem:[%s295 + $0x88] sm:$0xff]
        %v364 = vld [vmem:[%s295 + $0x90] sm:$0xff]
        %v365 = vld [vmem:[%s295 + $0x98] sm:$0xff]
        %v366 = vld [vmem:[%s295 + $0xa0] sm:$0xff]
        %v367 = vld [vmem:[%s295 + $0xa8] sm:$0xff]
        %v368 = vld [vmem:[%s295 + $0xb0] sm:$0xff]
        %v369 = vld [vmem:[%s295 + $0xb8] sm:$0xff]
        %v370 = vld [vmem:[%s307] sm:$0xff]
        %v371 = vld [vmem:[%s307 + $0x8] sm:$0xff]
        %v372 = vld [vmem:[%s307 + $0x10] sm:$0xff]
        %v373 = vld [vmem:[%s307 + $0x18] sm:$0xff]
        %v374 = vld [vmem:[%s307 + $0x20] sm:$0xff]
        %v375 = vld [vmem:[%s307 + $0x28] sm:$0xff]
        %v376 = vld [vmem:[%s307 + $0x30] sm:$0xff]
        %v377 = vld [vmem:[%s307 + $0x38] sm:$0xff]
        %v378 = vld [vmem:[%s307 + $0x40] sm:$0xff]
        %v379 = vld [vmem:[%s307 + $0x48] sm:$0xff]
        %v380 = vld [vmem:[%s307 + $0x50] sm:$0xff]
        %v381 = vld [vmem:[%s307 + $0x58] sm:$0xff]
        %v382 = vld [vmem:[%s307 + $0x60] sm:$0xff]
        %v383 = vld [vmem:[%s307 + $0x68] sm:$0xff]
        %v384 = vld [vmem:[%s307 + $0x70] sm:$0xff]
        %v385 = vld [vmem:[%s307 + $0x78] sm:$0xff]
        %v386 = vld [vmem:[%s307 + $0x80] sm:$0xff]
        %v387 = vld [vmem:[%s307 + $0x88] sm:$0xff]
        %v388 = vld [vmem:[%s307 + $0x90] sm:$0xff]
        %v389 = vld [vmem:[%s307 + $0x98] sm:$0xff]
        %v390 = vld [vmem:[%s307 + $0xa0] sm:$0xff]
        %v391 = vld [vmem:[%s307 + $0xa8] sm:$0xff]
        %v392 = vld [vmem:[%s307 + $0xb0] sm:$0xff]
        %v393 = vld [vmem:[%s307 + $0xb8] sm:$0xff]
        %v394 = vld [vmem:[%s307 + $0xc0] sm:$0xff]
        %v395 = vld [vmem:[%s307 + $0xc8] sm:$0xff]
        %v396 = vld [vmem:[%s307 + $0xd0] sm:$0xff]
        %v397 = vld [vmem:[%s307 + $0xd8] sm:$0xff]
        %v398 = vld [vmem:[%s307 + $0xe0] sm:$0xff]
        %v399 = vld [vmem:[%s307 + $0xe8] sm:$0xff]
        %v400 = vld [vmem:[%s307 + $0xf0] sm:$0xff]
        %v401 = vld [vmem:[%s307 + $0xf8] sm:$0xff]
        %402 = vmatprep.subr.mxu0 %v371
        %403 = vmatpush1.xpose.msra.mxu0 %v370
        %404 = vmatprep.subr.mxu0 %v373
        %405 = vmatpush1.xpose.msra.mxu0 %v372
        %406 = vmatprep.subr.mxu0 %v375
        %407 = vmatpush1.xpose.msra.mxu0 %v374
        %408 = vmatprep.subr.mxu0 %v377
        %409 = vmatpush1.xpose.msra.mxu0 %v376
        %410 = vmatprep.subr.mxu0 %v379
        %411 = vmatpush1.xpose.msra.mxu0 %v378
        %412 = vmatprep.subr.mxu0 %v381
        %413 = vmatpush1.xpose.msra.mxu0 %v380
        %414 = vmatprep.subr.mxu0 %v383
        %415 = vmatpush1.xpose.msra.mxu0 %v382
        %416 = vmatprep.subr.mxu0 %v385
        %417 = vmatpush1.xpose.msra.mxu0 %v384
        %418 = vmatprep.subr.mxu0 %v387
        %419 = vmatpush1.xpose.msra.mxu0 %v386
        %420 = vmatprep.subr.mxu0 %v389
        %421 = vmatpush1.xpose.msra.mxu0 %v388
        %422 = vmatprep.subr.mxu0 %v391
        %423 = vmatpush1.xpose.msra.mxu0 %v390
        %424 = vmatprep.subr.mxu0 %v393
        %425 = vmatpush1.xpose.msra.mxu0 %v392
        %426 = vmatprep.subr.mxu0 %v395
        %427 = vmatpush1.xpose.msra.mxu0 %v394
        %428 = vmatprep.subr.mxu0 %v397
        %429 = vmatpush1.xpose.msra.mxu0 %v396
        %430 = vmatprep.subr.mxu0 %v399
        %431 = vmatpush1.xpose.msra.mxu0 %v398
        %432 = vmatprep.subr.mxu0 %v401
        %433 = vmatpush1.xpose.msra.mxu0 %v400
        %434 = vmatprep.subr.mxu0 0.0
        %435 = vmatpush1.xpose.msra.mxu0 0.0
        %436 = vmatprep.subr.mxu0 0.0
        %437 = vmatpush1.xpose.msra.mxu0 0.0
        %438 = vmatprep.subr.mxu0 0.0
        %439 = vmatpush1.xpose.msra.mxu0 0.0
        %440 = vmatprep.subr.mxu0 0.0
        %441 = vmatpush1.xpose.msra.mxu0 0.0
        %442 = vmatprep.subr.mxu0 0.0
        %443 = vmatpush1.xpose.msra.mxu0 0.0
        %444 = vmatprep.subr.mxu0 0.0
        %445 = vmatpush1.xpose.msra.mxu0 0.0
        %446 = vmatprep.subr.mxu0 0.0
        %447 = vmatpush1.xpose.msra.mxu0 0.0
        %448 = vmatprep.subr.mxu0 0.0
        %449 = vmatpush1.xpose.msra.mxu0 0.0
        %450 = vmatprep.subr.mxu0 0.0
        %451 = vmatpush1.xpose.msra.mxu0 0.0
        %452 = vmatprep.subr.mxu0 0.0
        %453 = vmatpush1.xpose.msra.mxu0 0.0
        %454 = vmatprep.subr.mxu0 0.0
        %455 = vmatpush1.xpose.msra.mxu0 0.0
        %456 = vmatprep.subr.mxu0 0.0
        %457 = vmatpush1.xpose.msra.mxu0 0.0
        %458 = vmatprep.subr.mxu0 0.0
        %459 = vmatpush1.xpose.msra.mxu0 0.0
        %460 = vmatprep.subr.mxu0 0.0
        %461 = vmatpush1.xpose.msra.mxu0 0.0
        %462 = vmatprep.subr.mxu0 0.0
        %463 = vmatpush1.xpose.msra.mxu0 0.0
        %464 = vmatprep.subr.mxu0 0.0
        %465 = vmatpush1.xpose.msra.mxu0 0.0
        %466 = vmatprep.mubr.f32.mxu0 %v347
        %467 = vmatmul.mubr.f32.gmra.mrb[0].mxu0 %v346
        %v468 = vpop.f32.mrb[0].mxu0
        %v469 = vadd.f32 0.0, %v468
        %v470 = vpop.f32.mrb[0].mxu0
        %471 = vmatprep.mubr.f32.mxu0 %v349
        %472 = vmatmul.mubr.f32.gmra.mrb[0].mxu0 %v348
        %v473 = vpop.f32.mrb[0].mxu0
        %v474 = vadd.f32 0.0, %v473
        %v475 = vpop.f32.mrb[0].mxu0
        %476 = vmatprep.mubr.f32.mxu0 %v351
        %477 = vmatmul.mubr.f32.gmra.mrb[0].mxu0 %v350
        %v478 = vpop.f32.mrb[0].mxu0
        %v479 = vadd.f32 0.0, %v478
        %v480 = vpop.f32.mrb[0].mxu0
        %481 = vmatprep.mubr.f32.mxu0 %v353
        %482 = vmatmul.mubr.f32.gmra.mrb[0].mxu0 %v352
        %v483 = vpop.f32.mrb[0].mxu0
        %v484 = vadd.f32 0.0, %v483
        %v485 = vpop.f32.mrb[0].mxu0
        %486 = vmatprep.mubr.f32.mxu0 %v355
        %487 = vmatmul.mubr.f32.gmra.mrb[0].mxu0 %v354
        %v488 = vpop.f32.mrb[0].mxu0
        %v489 = vadd.f32 0.0, %v488
        %v490 = vpop.f32.mrb[0].mxu0
        %491 = vmatprep.mubr.f32.mxu0 %v357
        %492 = vmatmul.mubr.f32.gmra.mrb[0].mxu0 %v356
        %v493 = vpop.f32.mrb[0].mxu0
        %v494 = vadd.f32 0.0, %v493
        %v495 = vpop.f32.mrb[0].mxu0
        %496 = vmatprep.mubr.f32.mxu0 %v359
        %497 = vmatmul.mubr.f32.gmra.mrb[0].mxu0 %v358
        %v498 = vpop.f32.mrb[0].mxu0
        %v499 = vadd.f32 0.0, %v498
        %v500 = vpop.f32.mrb[0].mxu0
        %501 = vmatprep.mubr.f32.mxu0 %v361
        %502 = vmatmul.mubr.f32.gmra.mrb[0].mxu0 %v360
        %v503 = vpop.f32.mrb[0].mxu0
        %v504 = vadd.f32 0.0, %v503
        %v505 = vpop.f32.mrb[0].mxu0
        %506 = vmatprep.mubr.f32.mxu0 %v363
        %507 = vmatmul.mubr.f32.gmra.mrb[0].mxu0 %v362
        %v508 = vpop.f32.mrb[0].mxu0
        %v509 = vadd.f32 0.0, %v508
        %v510 = vpop.f32.mrb[0].mxu0
        %511 = vmatprep.mubr.f32.mxu0 %v365
        %512 = vmatmul.mubr.f32.gmra.mrb[0].mxu0 %v364
        %v513 = vpop.f32.mrb[0].mxu0
        %v514 = vadd.f32 0.0, %v513
        %v515 = vpop.f32.mrb[0].mxu0
        %516 = vmatprep.mubr.f32.mxu0 %v367
        %517 = vmatmul.mubr.f32.gmra.mrb[0].mxu0 %v366
        %v518 = vpop.f32.mrb[0].mxu0
        %v519 = vadd.f32 0.0, %v518
        %v520 = vpop.f32.mrb[0].mxu0
        %521 = vmatprep.mubr.f32.mxu0 %v369
        %522 = vmatmul.mubr.f32.gmra.mrb[0].mxu0 %v368
        %v523 = vpop.f32.mrb[0].mxu0
        %v524 = vadd.f32 0.0, %v523
        %v525 = vpop.f32.mrb[0].mxu0
        %526 = vdwg.mxu0
        %v527 = vadd.f32 %v334, %v469
        %v528 = vadd.f32 %v335, %v474
        %v529 = vadd.f32 %v336, %v479
        %v530 = vadd.f32 %v337, %v484
        %v531 = vadd.f32 %v338, %v489
        %v532 = vadd.f32 %v339, %v494
        %v533 = vadd.f32 %v340, %v499
        %v534 = vadd.f32 %v341, %v504
        %v535 = vadd.f32 %v342, %v509
        %v536 = vadd.f32 %v343, %v514
        %v537 = vadd.f32 %v344, %v519
        %v538 = vadd.f32 %v345, %v524
        %539 = vst [vmem:[#allocation2] sm:$0xff] %v527
        %540 = vst [vmem:[#allocation2 + $0x8] sm:$0xff] %v528
        %541 = vst [vmem:[#allocation2 + $0x10] sm:$0xff] %v529
        %542 = vst [vmem:[#allocation2 + $0x18] sm:$0xff] %v530
        %543 = vst [vmem:[#allocation2 + $0x20] sm:$0xff] %v531
        %544 = vst [vmem:[#allocation2 + $0x28] sm:$0xff] %v532
        %545 = vst [vmem:[#allocation2 + $0x30] sm:$0xff] %v533
        %546 = vst [vmem:[#allocation2 + $0x38] sm:$0xff] %v534
        %547 = vst [vmem:[#allocation2 + $0x40] sm:$0xff] %v535
        %548 = vst [vmem:[#allocation2 + $0x48] sm:$0xff] %v536
        %549 = vst [vmem:[#allocation2 + $0x50] sm:$0xff] %v537
        %550 = vst [vmem:[#allocation2 + $0x58] sm:$0xff] %v538
        // Predicated region
        $region41: #{task_wise_merged_linear.3} parent=35 // pred_check
          %p551 = pneg %p318
        $region42: #{task_wise_merged_linear.3} parent=35 // pred_check_branch
          %553 = sbr.rel (%p551) target = $region44
        $region43: #{task_wise_merged_linear.3} parent=35 // pred_region
          %v554 = vld [vmem:[%s312] sm:$0x1]
          %s555 = sld [smem:[#allocation4]]
          %s556 = smax.f32 %s555, 0.0
          %s557 = smin.f32 %s556, 1.0
          %v558 = vld [vmem:[%s316] sm:$0x1]
          %v559 = vstv %s557
          %v560 = vmul.f32 %v559, %v558
          %v561 = vadd.f32 %v554, %v560
          %s562 = sld [smem:[#allocation4 + $0x1]]
          %s563 = smax.f32 %s562, 0.0
          %s564 = smin.f32 %s563, 1.0
          %v565 = vld [vmem:[%s316 + $0x1] sm:$0x1]
          %v566 = vstv %s564
          %v567 = vmul.f32 %v566, %v565
          %v568 = vadd.f32 %v561, %v567
          %s569 = sld [smem:[#allocation4 + $0x2]]
          %s570 = smax.f32 %s569, 0.0
          %s571 = smin.f32 %s570, 1.0
          %v572 = vld [vmem:[%s316 + $0x2] sm:$0x1]
          %v573 = vstv %s571
          %v574 = vmul.f32 %v573, %v572
          %v575 = vadd.f32 %v568, %v574
          %v576 = vld [vmem:[#allocation2] sm:$0xff]
          %v577 = vld [vmem:[#allocation2 + $0x8] sm:$0xff]
          %v578 = vld [vmem:[#allocation2 + $0x10] sm:$0xff]
          %v579 = vld [vmem:[#allocation2 + $0x18] sm:$0xff]
          %v580 = vld [vmem:[#allocation2 + $0x20] sm:$0xff]
          %v581 = vld [vmem:[#allocation2 + $0x28] sm:$0xff]
          %v582 = vld [vmem:[#allocation2 + $0x30] sm:$0xff]
          %v583 = vld [vmem:[#allocation2 + $0x38] sm:$0xff]
          %v584 = vld [vmem:[#allocation2 + $0x40] sm:$0xff]
          %v585 = vld [vmem:[#allocation2 + $0x48] sm:$0xff]
          %v586 = vld [vmem:[#allocation2 + $0x50] sm:$0xff]
          %v587 = vld [vmem:[#allocation2 + $0x58] sm:$0xff]
          %v589 = vlaneseq
          %v590 = vshrl.u32 %v589, 7
          %v591 = vsub.s32 0, %v590
          %v592 = vrot.slane %v575, %v591
          %v594 = vadd.f32 %v576, %v592
          %v595 = vadd.f32 %v577, %v592
          %v596 = vadd.f32 %v578, %v592
          %v597 = vadd.f32 %v579, %v592
          %v598 = vadd.f32 %v580, %v592
          %v599 = vadd.f32 %v581, %v592
          %v600 = vadd.f32 %v582, %v592
          %v601 = vadd.f32 %v583, %v592
          %v602 = vadd.f32 %v584, %v592
          %v603 = vadd.f32 %v585, %v592
          %v604 = vadd.f32 %v586, %v592
          %v605 = vadd.f32 %v587, %v592
          %606 = vst [vmem:[%s285] sm:$0xff] %v594
          %607 = vst [vmem:[%s285 + $0x8] sm:$0xff] %v595
          %608 = vst [vmem:[%s285 + $0x10] sm:$0xff] %v596
          %609 = vst [vmem:[%s285 + $0x18] sm:$0xff] %v597
          %610 = vst [vmem:[%s285 + $0x20] sm:$0xff] %v598
          %611 = vst [vmem:[%s285 + $0x28] sm:$0xff] %v599
          %612 = vst [vmem:[%s285 + $0x30] sm:$0xff] %v600
          %613 = vst [vmem:[%s285 + $0x38] sm:$0xff] %v601
          %614 = vst [vmem:[%s285 + $0x40] sm:$0xff] %v602
          %615 = vst [vmem:[%s285 + $0x48] sm:$0xff] %v603
          %616 = vst [vmem:[%s285 + $0x50] sm:$0xff] %v604
          %617 = vst [vmem:[%s285 + $0x58] sm:$0xff] %v605
        $region44: #{task_wise_merged_linear.3} parent=35 // pred_fallthru
          _
        %s618 = sand.u32 %s162, 1
        %s619 = scalar_lea.sflag [#allocation6], %s618
        %s620 = sand.u32 %s162, 1
        %s621 = smul.addr %s620, 96
        %s622 = scalar_lea.vmem [#allocation5], %s621
        // Predicated region
        $region45: #{task_wise_merged_linear.3} parent=35 // pred_check
          %p623 = pneg %p172
        $region46: #{task_wise_merged_linear.3} parent=35 // pred_check_branch
          %625 = sbr.rel (%p623) target = $region48
        $region47: #{task_wise_merged_linear.3} parent=35 // pred_region
          %s626 = smul.u32 12, %s30
          %s628 = ssub.s32 1536, 1536
          %629 = vsyncadd %s619, %s628
          %s630 = smul.addr %s626, 3
          %s631 = sadd.s32 %s31, %s630
          %s632 = smul.addr %s631, 128
          %s633 = scalar_lea.hbm %s5, %s632
          %s634 = sshll.u32 %s622, 4
          %s635 = int_to_ptr.vmem [resolvable:$true] %s634
          %640 = dma.vmem_to_hbm [thread:$0]  %s635, 1536, %s633, %s619, 128, 384, 8
        $region48: #{task_wise_merged_linear.3} parent=35 // pred_fallthru
          _
      $region36: #{task_wise_merged_linear.3} parent=5 // pred_fallthru
        _
      %p641 = scmp.le.s32.totalorder 2, %s20
      // Predicated region
      $region49: #{task_wise_merged_linear.3} parent=5 // pred_check
        %p642 = pneg %p641
      $region50: #{task_wise_merged_linear.3} parent=5 // pred_check_branch
        %644 = sbr.rel (%p642) target = $region52
      $region51: #{task_wise_merged_linear.3} parent=5 // pred_region
        %s645 = ssub.s32 %s20, 2
        // Predicated region
        $region53: #{task_wise_merged_linear.3} parent=51 // pred_check
          %p646 = pneg %p178
        $region54: #{task_wise_merged_linear.3} parent=51 // pred_check_branch
          %648 = sbr.rel (%p646) target = $region56
        $region55: #{task_wise_merged_linear.3} parent=51 // pred_region
          %s649 = sand.u32 %s163, 1
          %s650 = scalar_lea.sflag [#allocation6], %s649
          %s651 = sand.u32 %s163, 1
          %s652 = smul.addr %s651, 96
          %s653 = scalar_lea.vmem [#allocation5], %s652
          %654 = dma.done %s650, 1536
        $region56: #{task_wise_merged_linear.3} parent=51 // pred_fallthru
          _
      $region52: #{task_wise_merged_linear.3} parent=5 // pred_fallthru
        _
    $region6: #{task_wise_merged_linear.3} parent=1 // loop_footer
      %s24 = sadd.s32 1, %s20
    $region7: #{task_wise_merged_linear.3} parent=1 // loop_footer_branch
      %19 = sbr.rel target = $region3
    $region8: #{task_wise_merged_linear.3} parent=1 // loop_exit
      _
    %655 = vsyncpa [#allocation6], 1
    %s656 = scalar_lea.sflag [#allocation6], 1
    %657 = vsyncpa %s656, 1

// kernel: task_wise_merged_linear.2
$region0: #{task_wise_merged_linear.2}
  #allocation0 [shape = 'u32[]', space=smem, size = 0x4, offset = 0x4, fixed_abs, tag = 'smem constant byte address 0x4 - core index']
  #allocation1 [shape = 'u32[144,128]{1,0:T(1,128)}', space=vmem, size = 0x12000, scoped, tag = 'internal scratch']
  #allocation2 [shape = 's32[1]{0}', space=sflag, size = 0x4, scoped, tag = 'scoped memory for task_wise_merged_linear.2']
  #allocation3 [shape = 'u8[512]{0}', space=smem, size = 0x200, scoped, tag = 'prefetched SMEM operand 0']
  %s0 = inlined_call_operand.vmem [shape: f32[3], index: 0, kind: input, shape index: {}]
  %s1 = inlined_call_operand.vmem [shape: f32[384,256], index: 1, kind: input, shape index: {}]
  %s2 = inlined_call_operand.vmem [shape: f32[3,384,256], index: 2, kind: input, shape index: {}]
  %s3 = inlined_call_operand.vmem [shape: f32[384,256], index: 3, kind: output, shape index: {}]
  %s4 = sld [smem:[#allocation0]]
  $region64: #{task_wise_merged_linear.2} parent=0
    _
  %s6 = ssub.s32 1, %s4
  %s7 = scalar_select 0, %s6, %s4
  %s8 = sshll.u32 %s0, 4
  %s9 = int_to_ptr.vmem [resolvable:$true] %s8
  %11 = dma.vmem_to_smem %s9, 16, [#allocation3], [#allocation2]
  %12 = dma.done [#allocation2], 16
  %13 = sfence
  $region1: #{task_wise_merged_linear.2} parent=0
    #allocation4 [shape = 'u8[786432]{0}', space=vmem, size = 0xc0000, scoped, tag = 'input window, operand 2']
    loop: start=0, step=1, limit=5
    $region2: #{task_wise_merged_linear.2} parent=1 // loop_pre_header
      _
    $region3: #{task_wise_merged_linear.2} parent=1 // loop_header
      %s15 = sphi 0, %s19
      %p16 = scmp.ge.s32.totalorder %s15, 5
      %s22 = sphi 0, %s34
      %s23 = sphi 0, %s30
      %s24 = sphi 0, %s22
      %s25 = sphi 0, %s23
      %s26 = sphi 0, %s24
      %s27 = sphi 0, %s25
      %s39 = sphi 0, %s41
      %s42 = sphi 0, %s39
      %s43 = sphi 0, %s42
      %s59 = sphi 0, %s43
      %s67 = sphi 0, %s69
      %s70 = sphi 0, %s67
      %s71 = sphi 0, %s70
      %s87 = sphi 0, %s71
      %s95 = sphi 0, %s97
      %s98 = sphi 0, %s95
      %s99 = sphi 0, %s98
      %s115 = sphi 0, %s99
    $region4: #{task_wise_merged_linear.2} parent=1 // loop_header_branch
      %18 = sbr.rel (%p16) target = $region8
    $region5: #{task_wise_merged_linear.2} parent=1 // loop_body
      %s20 = ssub.s32 %s15, 1
      %s21 = ssub.s32 %s15, 2
      %s28 = sadd.s32 1, %s23
      %p29 = scmp.ge.s32.totalorder %s28, 1
      %s30 = scalar_select %p29, 0, %s28
      %s31 = sadd.s32 1, %s22
      %s32 = scalar_select %p29, %s31, %s22
      %p33 = scmp.ge.s32.totalorder %s32, 3
      %s34 = scalar_select %p33, 0, %s32
      %s35 = ssub.s32 %s22, %s34
      %s36 = ssub.s32 %s23, %s30
      %s37 = sor.u32 %s35, %s36
      %p38 = scmp.eq.s32.totalorder %s37, 0
      %s40 = sadd.s32 %s39, 1
      %s41 = scalar_select %p38, %s39, %s40
      %p44 = pneg %p38
      %p45 = scmp.eq.s32.totalorder %s15, 2
      %p46 = por %p44, %p45
      %p47 = scmp.ne.s32.totalorder %s39, %s42
      %p48 = scmp.eq.s32.totalorder %s15, 0
      %p49 = por %p47, %p48
      %p50 = scmp.ne.s32.totalorder %s39, %s42
      %p51 = scmp.eq.s32.totalorder %s20, 2
      %p52 = por %p50, %p51
      %p53 = scmp.ne.s32.totalorder %s42, %s43
      %p54 = scmp.eq.s32.totalorder %s20, 0
      %p55 = por %p53, %p54
      %p56 = scmp.ne.s32.totalorder %s42, %s43
      %p57 = scmp.eq.s32.totalorder %s21, 2
      %p58 = por %p56, %p57
      %p60 = scmp.ne.s32.totalorder %s43, %s59
      %p61 = scmp.eq.s32.totalorder %s21, 0
      %p62 = por %p60, %p61
      %s63 = ssub.s32 %s22, %s34
      %s64 = ssub.s32 %s23, %s30
      %s65 = sor.u32 %s63, %s64
      %p66 = scmp.eq.s32.totalorder %s65, 0
      %s68 = sadd.s32 %s67, 1
      %s69 = scalar_select %p66, %s67, %s68
      %p72 = pneg %p66
      %p73 = scmp.eq.s32.totalorder %s15, 2
      %p74 = por %p72, %p73
      %p75 = scmp.ne.s32.totalorder %s67, %s70
      %p76 = scmp.eq.s32.totalorder %s15, 0
      %p77 = por %p75, %p76
      %p78 = scmp.ne.s32.totalorder %s67, %s70
      %p79 = scmp.eq.s32.totalorder %s20, 2
      %p80 = por %p78, %p79
      %p81 = scmp.ne.s32.totalorder %s70, %s71
      %p82 = scmp.eq.s32.totalorder %s20, 0
      %p83 = por %p81, %p82
      %p84 = scmp.ne.s32.totalorder %s70, %s71
      %p85 = scmp.eq.s32.totalorder %s21, 2
      %p86 = por %p84, %p85
      %p88 = scmp.ne.s32.totalorder %s71, %s87
      %p89 = scmp.eq.s32.totalorder %s21, 0
      %p90 = por %p88, %p89
      %s91 = ssub.s32 %s22, %s34
      %s92 = ssub.s32 %s23, %s30
      %s93 = sor.u32 %s91, %s92
      %p94 = scmp.eq.s32.totalorder %s93, 0
      %s96 = sadd.s32 %s95, 1
      %s97 = scalar_select %p94, %s95, %s96
      %p100 = pneg %p94
      %p101 = scmp.eq.s32.totalorder %s15, 2
      %p102 = por %p100, %p101
      %p103 = scmp.ne.s32.totalorder %s95, %s98
      %p104 = scmp.eq.s32.totalorder %s15, 0
      %p105 = por %p103, %p104
      %p106 = scmp.ne.s32.totalorder %s95, %s98
      %p107 = scmp.eq.s32.totalorder %s20, 2
      %p108 = por %p106, %p107
      %p109 = scmp.ne.s32.totalorder %s98, %s99
      %p110 = scmp.eq.s32.totalorder %s20, 0
      %p111 = por %p109, %p110
      %p112 = scmp.ne.s32.totalorder %s98, %s99
      %p113 = scmp.eq.s32.totalorder %s21, 2
      %p114 = por %p112, %p113
      %p116 = scmp.ne.s32.totalorder %s99, %s115
      %p117 = scmp.eq.s32.totalorder %s21, 0
      %p118 = por %p116, %p117
      %p119 = scmp.le.s32.totalorder 1, %s15
      %p120 = scmp.lt.s32.totalorder %s15, 4
      %p121 = pnand %p119, %p120
      %p122 = pneg %p121
      // Predicated region
      $region9: #{task_wise_merged_linear.2} parent=5 // pred_check
        _
      $region10: #{task_wise_merged_linear.2} parent=5 // pred_check_branch
        %124 = sbr.rel (%p121) target = $region12
      $region11: #{task_wise_merged_linear.2} parent=5 // pred_region
        %s125 = ssub.s32 %s15, 1
      $region12: #{task_wise_merged_linear.2} parent=5 // pred_fallthru
        _
      %p126 = scmp.lt.s32.totalorder %s15, 3
      // Predicated region
      $region13: #{task_wise_merged_linear.2} parent=5 // pred_check
        %p127 = pneg %p126
      $region14: #{task_wise_merged_linear.2} parent=5 // pred_check_branch
        %129 = sbr.rel (%p127) target = $region16
      $region15: #{task_wise_merged_linear.2} parent=5 // pred_region
        // Predicated region
        $region17: #{task_wise_merged_linear.2} parent=15 // pred_check
          %p130 = pneg %p49
        $region18: #{task_wise_merged_linear.2} parent=15 // pred_check_branch
          %132 = sbr.rel (%p130) target = $region20
        $region19: #{task_wise_merged_linear.2} parent=15 // pred_region
          %s133 = smul.u32 16, %s22
          %s134 = smul.u32 2, %s23
          %p135 = scmp.lt.s32.totalorder %s133, 47
          %s136 = scalar_select %p135, %s133, 47
          %p137 = scmp.lt.s32.totalorder %s134, 1
          %s138 = scalar_select %p137, %s134, 1
          %s139 = smul.addr %s136, 2
          %s140 = sadd.s32 %s138, %s139
          %s141 = smul.addr %s140, 8
          %s142 = scalar_lea.vmem %s1, %s141
          %s143 = smul.u32 16, %s22
          %s144 = smul.u32 2, %s23
        $region20: #{task_wise_merged_linear.2} parent=15 // pred_fallthru
          _
        // Predicated region
        $region21: #{task_wise_merged_linear.2} parent=15 // pred_check
          %p145 = pneg %p77
        $region22: #{task_wise_merged_linear.2} parent=15 // pred_check_branch
          %147 = sbr.rel (%p145) target = $region24
        $region23: #{task_wise_merged_linear.2} parent=15 // pred_region
          %s148 = sand.u32 %s67, 1
          %s149 = sand.u32 %s67, 1
          %s150 = smul.addr %s149, 768
          %s151 = scalar_lea.vmem [#allocation4], %s150
          %s152 = smul.u32 16, %s22
          %s153 = smul.u32 2, %s23
          %s154 = smul.addr %s152, 2
          %s155 = sadd.s32 %s153, %s154
          %s156 = smul.addr %s155, 8
          %s157 = scalar_lea.vmem %s2, %s156
          // Predicated region
          $region25: #{task_wise_merged_linear.2} parent=23 // pred_check
            _
          $region26: #{task_wise_merged_linear.2} parent=23 // pred_check_branch
            %159 = sbr.rel (0) target = $region28
          $region27: #{task_wise_merged_linear.2} parent=23 // pred_region
            // Predicated region
            $region29: #{task_wise_merged_linear.2} parent=27 // pred_check
              _
            $region30: #{task_wise_merged_linear.2} parent=27 // pred_check_branch
              %161 = sbr.rel (0) target = $region32
            $region31: #{task_wise_merged_linear.2} parent=27 // pred_region
              loop: start=0, step=1, limit=1
              $region33: #{task_wise_merged_linear.2} parent=31 // loop_pre_header
                _
              $region34: #{task_wise_merged_linear.2} parent=31 // loop_header
                %s163 = sphi 0, %s167
                %p164 = scmp.ge.s32.totalorder %s163, 1
                %s168 = sphi %s157, %s157
                %s169 = sphi %s151, %s151
              $region35: #{task_wise_merged_linear.2} parent=31 // loop_header_branch
                %166 = sbr.rel (%p164) target = $region39
              $region36: #{task_wise_merged_linear.2} parent=31 // loop_body
                %v170 = vld [vmem:[%s168] sm:$0xff]
                %171 = vst [vmem:[%s169] sm:$0xff] %v170
                %v172 = vld [vmem:[%s168 + $0x8] sm:$0xff]
                %173 = vst [vmem:[%s169 + $0x8] sm:$0xff] %v172
                %v174 = vld [vmem:[%s168 + $0x10] sm:$0xff]
                %175 = vst [vmem:[%s169 + $0x10] sm:$0xff] %v174
                %v176 = vld [vmem:[%s168 + $0x18] sm:$0xff]
                %177 = vst [vmem:[%s169 + $0x18] sm:$0xff] %v176
                %v178 = vld [vmem:[%s168 + $0x20] sm:$0xff]
                %179 = vst [vmem:[%s169 + $0x20] sm:$0xff] %v178
                %v180 = vld [vmem:[%s168 + $0x28] sm:$0xff]
                %181 = vst [vmem:[%s169 + $0x28] sm:$0xff] %v180
                %v182 = vld [vmem:[%s168 + $0x30] sm:$0xff]
                %183 = vst [vmem:[%s169 + $0x30] sm:$0xff] %v182
                %v184 = vld [vmem:[%s168 + $0x38] sm:$0xff]
                %185 = vst [vmem:[%s169 + $0x38] sm:$0xff] %v184
                %v186 = vld [vmem:[%s168 + $0x40] sm:$0xff]
                %187 = vst [vmem:[%s169 + $0x40] sm:$0xff] %v186
                %v188 = vld [vmem:[%s168 + $0x48] sm:$0xff]
                %189 = vst [vmem:[%s169 + $0x48] sm:$0xff] %v188
                %v190 = vld [vmem:[%s168 + $0x50] sm:$0xff]
                %191 = vst [vmem:[%s169 + $0x50] sm:$0xff] %v190
                %v192 = vld [vmem:[%s168 + $0x58] sm:$0xff]
                %193 = vst [vmem:[%s169 + $0x58] sm:$0xff] %v192
                %v194 = vld [vmem:[%s168 + $0x60] sm:$0xff]
                %195 = vst [vmem:[%s169 + $0x60] sm:$0xff] %v194
                %v196 = vld [vmem:[%s168 + $0x68] sm:$0xff]
                %197 = vst [vmem:[%s169 + $0x68] sm:$0xff] %v196
                %v198 = vld [vmem:[%s168 + $0x70] sm:$0xff]
                %199 = vst [vmem:[%s169 + $0x70] sm:$0xff] %v198
                %v200 = vld [vmem:[%s168 + $0x78] sm:$0xff]
                %201 = vst [vmem:[%s169 + $0x78] sm:$0xff] %v200
                %v202 = vld [vmem:[%s168 + $0x80] sm:$0xff]
                %203 = vst [vmem:[%s169 + $0x80] sm:$0xff] %v202
                %v204 = vld [vmem:[%s168 + $0x88] sm:$0xff]
                %205 = vst [vmem:[%s169 + $0x88] sm:$0xff] %v204
                %v206 = vld [vmem:[%s168 + $0x90] sm:$0xff]
                %207 = vst [vmem:[%s169 + $0x90] sm:$0xff] %v206
                %v208 = vld [vmem:[%s168 + $0x98] sm:$0xff]
                %209 = vst [vmem:[%s169 + $0x98] sm:$0xff] %v208
                %v210 = vld [vmem:[%s168 + $0xa0] sm:$0xff]
                %211 = vst [vmem:[%s169 + $0xa0] sm:$0xff] %v210
                %v212 = vld [vmem:[%s168 + $0xa8] sm:$0xff]
                %213 = vst [vmem:[%s169 + $0xa8] sm:$0xff] %v212
                %v214 = vld [vmem:[%s168 + $0xb0] sm:$0xff]
                %215 = vst [vmem:[%s169 + $0xb0] sm:$0xff] %v214
                %v216 = vld [vmem:[%s168 + $0xb8] sm:$0xff]
                %217 = vst [vmem:[%s169 + $0xb8] sm:$0xff] %v216
                %v218 = vld [vmem:[%s168 + $0xc0] sm:$0xff]
                %219 = vst [vmem:[%s169 + $0xc0] sm:$0xff] %v218
                %v220 = vld [vmem:[%s168 + $0xc8] sm:$0xff]
                %221 = vst [vmem:[%s169 + $0xc8] sm:$0xff] %v220
                %v222 = vld [vmem:[%s168 + $0xd0] sm:$0xff]
                %223 = vst [vmem:[%s169 + $0xd0] sm:$0xff] %v222
                %v224 = vld [vmem:[%s168 + $0xd8] sm:$0xff]
                %225 = vst [vmem:[%s169 + $0xd8] sm:$0xff] %v224
                %v226 = vld [vmem:[%s168 + $0xe0] sm:$0xff]
                %227 = vst [vmem:[%s169 + $0xe0] sm:$0xff] %v226
                %v228 = vld [vmem:[%s168 + $0xe8] sm:$0xff]
                %229 = vst [vmem:[%s169 + $0xe8] sm:$0xff] %v228
                %v230 = vld [vmem:[%s168 + $0xf0] sm:$0xff]
                %231 = vst [vmem:[%s169 + $0xf0] sm:$0xff] %v230
                %v232 = vld [vmem:[%s168 + $0xf8] sm:$0xff]
                %233 = vst [vmem:[%s169 + $0xf8] sm:$0xff] %v232
                %v234 = vld [vmem:[%s168 + $0x300] sm:$0xff]
                %235 = vst [vmem:[%s169 + $0x100] sm:$0xff] %v234
                %v236 = vld [vmem:[%s168 + $0x308] sm:$0xff]
                %237 = vst [vmem:[%s169 + $0x108] sm:$0xff] %v236
                %v238 = vld [vmem:[%s168 + $0x310] sm:$0xff]
                %239 = vst [vmem:[%s169 + $0x110] sm:$0xff] %v238
                %v240 = vld [vmem:[%s168 + $0x318] sm:$0xff]
                %241 = vst [vmem:[%s169 + $0x118] sm:$0xff] %v240
                %v242 = vld [vmem:[%s168 + $0x320] sm:$0xff]
                %243 = vst [vmem:[%s169 + $0x120] sm:$0xff] %v242
                %v244 = vld [vmem:[%s168 + $0x328] sm:$0xff]
                %245 = vst [vmem:[%s169 + $0x128] sm:$0xff] %v244
                %v246 = vld [vmem:[%s168 + $0x330] sm:$0xff]
                %247 = vst [vmem:[%s169 + $0x130] sm:$0xff] %v246
                %v248 = vld [vmem:[%s168 + $0x338] sm:$0xff]
                %249 = vst [vmem:[%s169 + $0x138] sm:$0xff] %v248
                %v250 = vld [vmem:[%s168 + $0x340] sm:$0xff]
                %251 = vst [vmem:[%s169 + $0x140] sm:$0xff] %v250
                %v252 = vld [vmem:[%s168 + $0x348] sm:$0xff]
                %253 = vst [vmem:[%s169 + $0x148] sm:$0xff] %v252
                %v254 = vld [vmem:[%s168 + $0x350] sm:$0xff]
                %255 = vst [vmem:[%s169 + $0x150] sm:$0xff] %v254
                %v256 = vld [vmem:[%s168 + $0x358] sm:$0xff]
                %257 = vst [vmem:[%s169 + $0x158] sm:$0xff] %v256
                %v258 = vld [vmem:[%s168 + $0x360] sm:$0xff]
                %259 = vst [vmem:[%s169 + $0x160] sm:$0xff] %v258
                %v260 = vld [vmem:[%s168 + $0x368] sm:$0xff]
                %261 = vst [vmem:[%s169 + $0x168] sm:$0xff] %v260
                %v262 = vld [vmem:[%s168 + $0x370] sm:$0xff]
                %263 = vst [vmem:[%s169 + $0x170] sm:$0xff] %v262
                %v264 = vld [vmem:[%s168 + $0x378] sm:$0xff]
                %265 = vst [vmem:[%s169 + $0x178] sm:$0xff] %v264
                %v266 = vld [vmem:[%s168 + $0x380] sm:$0xff]
                %267 = vst [vmem:[%s169 + $0x180] sm:$0xff] %v266
                %v268 = vld [vmem:[%s168 + $0x388] sm:$0xff]
                %269 = vst [vmem:[%s169 + $0x188] sm:$0xff] %v268
                %v270 = vld [vmem:[%s168 + $0x390] sm:$0xff]
                %271 = vst [vmem:[%s169 + $0x190] sm:$0xff] %v270
                %v272 = vld [vmem:[%s168 + $0x398] sm:$0xff]
                %273 = vst [vmem:[%s169 + $0x198] sm:$0xff] %v272
                %v274 = vld [vmem:[%s168 + $0x3a0] sm:$0xff]
                %275 = vst [vmem:[%s169 + $0x1a0] sm:$0xff] %v274
                %v276 = vld [vmem:[%s168 + $0x3a8] sm:$0xff]
                %277 = vst [vmem:[%s169 + $0x1a8] sm:$0xff] %v276
                %v278 = vld [vmem:[%s168 + $0x3b0] sm:$0xff]
                %279 = vst [vmem:[%s169 + $0x1b0] sm:$0xff] %v278
                %v280 = vld [vmem:[%s168 + $0x3b8] sm:$0xff]
                %281 = vst [vmem:[%s169 + $0x1b8] sm:$0xff] %v280
                %v282 = vld [vmem:[%s168 + $0x3c0] sm:$0xff]
                %283 = vst [vmem:[%s169 + $0x1c0] sm:$0xff] %v282
                %v284 = vld [vmem:[%s168 + $0x3c8] sm:$0xff]
                %285 = vst [vmem:[%s169 + $0x1c8] sm:$0xff] %v284
                %v286 = vld [vmem:[%s168 + $0x3d0] sm:$0xff]
                %287 = vst [vmem:[%s169 + $0x1d0] sm:$0xff] %v286
                %v288 = vld [vmem:[%s168 + $0x3d8] sm:$0xff]
                %289 = vst [vmem:[%s169 + $0x1d8] sm:$0xff] %v288
                %v290 = vld [vmem:[%s168 + $0x3e0] sm:$0xff]
                %291 = vst [vmem:[%s169 + $0x1e0] sm:$0xff] %v290
                %v292 = vld [vmem:[%s168 + $0x3e8] sm:$0xff]
                %293 = vst [vmem:[%s169 + $0x1e8] sm:$0xff] %v292
                %v294 = vld [vmem:[%s168 + $0x3f0] sm:$0xff]
                %295 = vst [vmem:[%s169 + $0x1f0] sm:$0xff] %v294
                %v296 = vld [vmem:[%s168 + $0x3f8] sm:$0xff]
                %297 = vst [vmem:[%s169 + $0x1f8] sm:$0xff] %v296
                %v298 = vld [vmem:[%s168 + $0x600] sm:$0xff]
                %299 = vst [vmem:[%s169 + $0x200] sm:$0xff] %v298
                %v300 = vld [vmem:[%s168 + $0x608] sm:$0xff]
                %301 = vst [vmem:[%s169 + $0x208] sm:$0xff] %v300
                %v302 = vld [vmem:[%s168 + $0x610] sm:$0xff]
                %303 = vst [vmem:[%s169 + $0x210] sm:$0xff] %v302
                %v304 = vld [vmem:[%s168 + $0x618] sm:$0xff]
                %305 = vst [vmem:[%s169 + $0x218] sm:$0xff] %v304
                %v306 = vld [vmem:[%s168 + $0x620] sm:$0xff]
                %307 = vst [vmem:[%s169 + $0x220] sm:$0xff] %v306
                %v308 = vld [vmem:[%s168 + $0x628] sm:$0xff]
                %309 = vst [vmem:[%s169 + $0x228] sm:$0xff] %v308
                %v310 = vld [vmem:[%s168 + $0x630] sm:$0xff]
                %311 = vst [vmem:[%s169 + $0x230] sm:$0xff] %v310
                %v312 = vld [vmem:[%s168 + $0x638] sm:$0xff]
                %313 = vst [vmem:[%s169 + $0x238] sm:$0xff] %v312
                %v314 = vld [vmem:[%s168 + $0x640] sm:$0xff]
                %315 = vst [vmem:[%s169 + $0x240] sm:$0xff] %v314
                %v316 = vld [vmem:[%s168 + $0x648] sm:$0xff]
                %317 = vst [vmem:[%s169 + $0x248] sm:$0xff] %v316
                %v318 = vld [vmem:[%s168 + $0x650] sm:$0xff]
                %319 = vst [vmem:[%s169 + $0x250] sm:$0xff] %v318
                %v320 = vld [vmem:[%s168 + $0x658] sm:$0xff]
                %321 = vst [vmem:[%s169 + $0x258] sm:$0xff] %v320
                %v322 = vld [vmem:[%s168 + $0x660] sm:$0xff]
                %323 = vst [vmem:[%s169 + $0x260] sm:$0xff] %v322
                %v324 = vld [vmem:[%s168 + $0x668] sm:$0xff]
                %325 = vst [vmem:[%s169 + $0x268] sm:$0xff] %v324
                %v326 = vld [vmem:[%s168 + $0x670] sm:$0xff]
                %327 = vst [vmem:[%s169 + $0x270] sm:$0xff] %v326
                %v328 = vld [vmem:[%s168 + $0x678] sm:$0xff]
                %329 = vst [vmem:[%s169 + $0x278] sm:$0xff] %v328
                %v330 = vld [vmem:[%s168 + $0x680] sm:$0xff]
                %331 = vst [vmem:[%s169 + $0x280] sm:$0xff] %v330
                %v332 = vld [vmem:[%s168 + $0x688] sm:$0xff]
                %333 = vst [vmem:[%s169 + $0x288] sm:$0xff] %v332
                %v334 = vld [vmem:[%s168 + $0x690] sm:$0xff]
                %335 = vst [vmem:[%s169 + $0x290] sm:$0xff] %v334
                %v336 = vld [vmem:[%s168 + $0x698] sm:$0xff]
                %337 = vst [vmem:[%s169 + $0x298] sm:$0xff] %v336
                %v338 = vld [vmem:[%s168 + $0x6a0] sm:$0xff]
                %339 = vst [vmem:[%s169 + $0x2a0] sm:$0xff] %v338
                %v340 = vld [vmem:[%s168 + $0x6a8] sm:$0xff]
                %341 = vst [vmem:[%s169 + $0x2a8] sm:$0xff] %v340
                %v342 = vld [vmem:[%s168 + $0x6b0] sm:$0xff]
                %343 = vst [vmem:[%s169 + $0x2b0] sm:$0xff] %v342
                %v344 = vld [vmem:[%s168 + $0x6b8] sm:$0xff]
                %345 = vst [vmem:[%s169 + $0x2b8] sm:$0xff] %v344
                %v346 = vld [vmem:[%s168 + $0x6c0] sm:$0xff]
                %347 = vst [vmem:[%s169 + $0x2c0] sm:$0xff] %v346
                %v348 = vld [vmem:[%s168 + $0x6c8] sm:$0xff]
                %349 = vst [vmem:[%s169 + $0x2c8] sm:$0xff] %v348
                %v350 = vld [vmem:[%s168 + $0x6d0] sm:$0xff]
                %351 = vst [vmem:[%s169 + $0x2d0] sm:$0xff] %v350
                %v352 = vld [vmem:[%s168 + $0x6d8] sm:$0xff]
                %353 = vst [vmem:[%s169 + $0x2d8] sm:$0xff] %v352
                %v354 = vld [vmem:[%s168 + $0x6e0] sm:$0xff]
                %355 = vst [vmem:[%s169 + $0x2e0] sm:$0xff] %v354
                %v356 = vld [vmem:[%s168 + $0x6e8] sm:$0xff]
                %357 = vst [vmem:[%s169 + $0x2e8] sm:$0xff] %v356
                %v358 = vld [vmem:[%s168 + $0x6f0] sm:$0xff]
                %359 = vst [vmem:[%s169 + $0x2f0] sm:$0xff] %v358
                %v360 = vld [vmem:[%s168 + $0x6f8] sm:$0xff]
                %361 = vst [vmem:[%s169 + $0x2f8] sm:$0xff] %v360
              $region37: #{task_wise_merged_linear.2} parent=31 // loop_footer
                %s167 = sadd.s32 1, %s163
              $region38: #{task_wise_merged_linear.2} parent=31 // loop_footer_branch
                %162 = sbr.rel target = $region34
              $region39: #{task_wise_merged_linear.2} parent=31 // loop_exit
                _
            $region32: #{task_wise_merged_linear.2} parent=27 // pred_fallthru
              _
            // Predicated region
            $region40: #{task_wise_merged_linear.2} parent=27 // pred_check
              _
            $region41: #{task_wise_merged_linear.2} parent=27 // pred_check_branch
              %363 = sbr.rel target = $region43
            $region42: #{task_wise_merged_linear.2} parent=27 // pred_region
              _
            $region43: #{task_wise_merged_linear.2} parent=27 // pred_fallthru
              _
          $region28: #{task_wise_merged_linear.2} parent=23 // pred_fallthru
            _
          %364 = vnop
        $region24: #{task_wise_merged_linear.2} parent=15 // pred_fallthru
          _
      $region16: #{task_wise_merged_linear.2} parent=5 // pred_fallthru
        _
      %p365 = scmp.le.s32.totalorder 1, %s15
      %p366 = scmp.lt.s32.totalorder %s15, 4
      %p367 = pnand %p365, %p366
      %p368 = pneg %p367
      // Predicated region
      $region44: #{task_wise_merged_linear.2} parent=5 // pred_check
        _
      $region45: #{task_wise_merged_linear.2} parent=5 // pred_check_branch
        %370 = sbr.rel (%p367) target = $region47
      $region46: #{task_wise_merged_linear.2} parent=5 // pred_region
        %s371 = ssub.s32 %s15, 1
        %s372 = sand.u32 %s70, 1
        %s373 = sand.u32 %s70, 1
        %s374 = smul.addr %s373, 768
        %s375 = scalar_lea.vmem [#allocation4], %s374
        // Predicated region
        $region48: #{task_wise_merged_linear.2} parent=46 // pred_check
          %p376 = pneg %p83
        $region49: #{task_wise_merged_linear.2} parent=46 // pred_check_branch
          %378 = sbr.rel (%p376) target = $region51
        $region50: #{task_wise_merged_linear.2} parent=46 // pred_region
          _
        $region51: #{task_wise_merged_linear.2} parent=46 // pred_fallthru
          _
        %s379 = smul.u32 16, %s24
        %s380 = smul.u32 2, %s25
        %p381 = scmp.lt.s32.totalorder %s379, 47
        %s382 = scalar_select %p381, %s379, 47
        %p383 = scmp.lt.s32.totalorder %s380, 1
        %s384 = scalar_select %p383, %s380, 1
        %s385 = smul.addr %s382, 2
        %s386 = sadd.s32 %s384, %s385
        %s387 = smul.addr %s386, 8
        %s388 = scalar_lea.vmem %s1, %s387
        %p389 = pneg %p55
        %p390 = pneg %p52
        %s391 = sand.u32 %s70, 1
        %s392 = sand.u32 %s70, 1
        %s393 = smul.addr %s392, 768
        %s394 = scalar_lea.vmem [#allocation4], %s393
        %p395 = pneg %p83
        %p396 = pneg %p80
        %p397 = pneg %p111
        %p398 = pneg %p108
        %s399 = smul.u32 16, %s24
        %s400 = smul.u32 2, %s25
        %p401 = scmp.lt.s32.totalorder %s399, 47
        %s402 = scalar_select %p401, %s399, 47
        %p403 = scmp.lt.s32.totalorder %s400, 1
        %s404 = scalar_select %p403, %s400, 1
        %s405 = smul.addr %s402, 2
        %s406 = sadd.s32 %s404, %s405
        %s407 = smul.addr %s406, 8
        %s408 = scalar_lea.vmem %s3, %s407
        %s409 = smul.u32 16, %s24
        %s410 = smul.u32 2, %s25
        %p411 = scmp.lt.s32.totalorder %s409, 47
        %s412 = scalar_select %p411, %s409, 47
        %p413 = scmp.lt.s32.totalorder %s410, 1
        %s414 = scalar_select %p413, %s410, 1
        %s415 = smul.addr %s412, 2
        %s416 = sadd.s32 %s414, %s415
        %s417 = smul.addr %s416, 8
        %s418 = scalar_lea.vmem %s1, %s417
        %s419 = smul.u32 16, %s24
        %s420 = smul.u32 2, %s25
        %s421 = smul.u32 16, %s24
        %s422 = smul.u32 2, %s25
        %s423 = smul.u32 16, %s24
        %s424 = smul.u32 2, %s25
        %p425 = scmp.lt.s32.totalorder %s423, 47
        %s426 = scalar_select %p425, %s423, 47
        %p427 = scmp.lt.s32.totalorder %s424, 1
        %s428 = scalar_select %p427, %s424, 1
        %s429 = smul.addr %s426, 2
        %s430 = sadd.s32 %s428, %s429
        %s431 = smul.addr %s430, 8
        %s432 = scalar_lea.vmem %s3, %s431
        %s433 = smul.u32 16, %s24
        %s434 = smul.u32 2, %s25
        %v435 = vld [vmem:[%s418] sm:$0xff]
        %v436 = vld [vmem:[%s418 + $0x8] sm:$0xff]
        %v437 = vld [vmem:[%s418 + $0x10] sm:$0xff]
        %v438 = vld [vmem:[%s418 + $0x18] sm:$0xff]
        %v439 = vld [vmem:[%s418 + $0x20] sm:$0xff]
        %v440 = vld [vmem:[%s418 + $0x28] sm:$0xff]
        %v441 = vld [vmem:[%s418 + $0x30] sm:$0xff]
        %v442 = vld [vmem:[%s418 + $0x38] sm:$0xff]
        %v443 = vld [vmem:[%s418 + $0x40] sm:$0xff]
        %v444 = vld [vmem:[%s418 + $0x48] sm:$0xff]
        %v445 = vld [vmem:[%s418 + $0x50] sm:$0xff]
        %v446 = vld [vmem:[%s418 + $0x58] sm:$0xff]
        %v447 = vld [vmem:[%s418 + $0x60] sm:$0xff]
        %v448 = vld [vmem:[%s418 + $0x68] sm:$0xff]
        %v449 = vld [vmem:[%s418 + $0x70] sm:$0xff]
        %v450 = vld [vmem:[%s418 + $0x78] sm:$0xff]
        %v451 = vld [vmem:[%s418 + $0x80] sm:$0xff]
        %v452 = vld [vmem:[%s418 + $0x88] sm:$0xff]
        %v453 = vld [vmem:[%s418 + $0x90] sm:$0xff]
        %v454 = vld [vmem:[%s418 + $0x98] sm:$0xff]
        %v455 = vld [vmem:[%s418 + $0xa0] sm:$0xff]
        %v456 = vld [vmem:[%s418 + $0xa8] sm:$0xff]
        %v457 = vld [vmem:[%s418 + $0xb0] sm:$0xff]
        %v458 = vld [vmem:[%s418 + $0xb8] sm:$0xff]
        %v459 = vld [vmem:[%s418 + $0xc0] sm:$0xff]
        %v460 = vld [vmem:[%s418 + $0xc8] sm:$0xff]
        %v461 = vld [vmem:[%s418 + $0xd0] sm:$0xff]
        %v462 = vld [vmem:[%s418 + $0xd8] sm:$0xff]
        %v463 = vld [vmem:[%s418 + $0xe0] sm:$0xff]
        %v464 = vld [vmem:[%s418 + $0xe8] sm:$0xff]
        %v465 = vld [vmem:[%s418 + $0xf0] sm:$0xff]
        %v466 = vld [vmem:[%s418 + $0xf8] sm:$0xff]
        %467 = vst [vmem:[%s432] sm:$0xff] %v435
        %468 = vst [vmem:[%s432 + $0x8] sm:$0xff] %v436
        %469 = vst [vmem:[%s432 + $0x10] sm:$0xff] %v437
        %470 = vst [vmem:[%s432 + $0x18] sm:$0xff] %v438
        %471 = vst [vmem:[%s432 + $0x20] sm:$0xff] %v439
        %472 = vst [vmem:[%s432 + $0x28] sm:$0xff] %v440
        %473 = vst [vmem:[%s432 + $0x30] sm:$0xff] %v441
        %474 = vst [vmem:[%s432 + $0x38] sm:$0xff] %v442
        %475 = vst [vmem:[%s432 + $0x40] sm:$0xff] %v443
        %476 = vst [vmem:[%s432 + $0x48] sm:$0xff] %v444
        %477 = vst [vmem:[%s432 + $0x50] sm:$0xff] %v445
        %478 = vst [vmem:[%s432 + $0x58] sm:$0xff] %v446
        %479 = vst [vmem:[%s432 + $0x60] sm:$0xff] %v447
        %480 = vst [vmem:[%s432 + $0x68] sm:$0xff] %v448
        %481 = vst [vmem:[%s432 + $0x70] sm:$0xff] %v449
        %482 = vst [vmem:[%s432 + $0x78] sm:$0xff] %v450
        %483 = vst [vmem:[%s432 + $0x80] sm:$0xff] %v451
        %484 = vst [vmem:[%s432 + $0x88] sm:$0xff] %v452
        %485 = vst [vmem:[%s432 + $0x90] sm:$0xff] %v453
        %486 = vst [vmem:[%s432 + $0x98] sm:$0xff] %v454
        %487 = vst [vmem:[%s432 + $0xa0] sm:$0xff] %v455
        %488 = vst [vmem:[%s432 + $0xa8] sm:$0xff] %v456
        %489 = vst [vmem:[%s432 + $0xb0] sm:$0xff] %v457
        %490 = vst [vmem:[%s432 + $0xb8] sm:$0xff] %v458
        %491 = vst [vmem:[%s432 + $0xc0] sm:$0xff] %v459
        %492 = vst [vmem:[%s432 + $0xc8] sm:$0xff] %v460
        %493 = vst [vmem:[%s432 + $0xd0] sm:$0xff] %v461
        %494 = vst [vmem:[%s432 + $0xd8] sm:$0xff] %v462
        %495 = vst [vmem:[%s432 + $0xe0] sm:$0xff] %v463
        %496 = vst [vmem:[%s432 + $0xe8] sm:$0xff] %v464
        %497 = vst [vmem:[%s432 + $0xf0] sm:$0xff] %v465
        %498 = vst [vmem:[%s432 + $0xf8] sm:$0xff] %v466
        %s499 = sld [smem:[#allocation3]]
        %s500 = smax.f32 %s499, 0.0
        %s501 = smin.f32 %s500, 1.0
        %v502 = vld [vmem:[%s432] sm:$0xff]
        %v503 = vld [vmem:[%s432 + $0x8] sm:$0xff]
        %v504 = vld [vmem:[%s432 + $0x10] sm:$0xff]
        %v505 = vld [vmem:[%s432 + $0x18] sm:$0xff]
        %v506 = vld [vmem:[%s432 + $0x20] sm:$0xff]
        %v507 = vld [vmem:[%s432 + $0x28] sm:$0xff]
        %v508 = vld [vmem:[%s432 + $0x30] sm:$0xff]
        %v509 = vld [vmem:[%s432 + $0x38] sm:$0xff]
        %v510 = vld [vmem:[%s432 + $0x40] sm:$0xff]
        %v511 = vld [vmem:[%s432 + $0x48] sm:$0xff]
        %v512 = vld [vmem:[%s432 + $0x50] sm:$0xff]
        %v513 = vld [vmem:[%s432 + $0x58] sm:$0xff]
        %v514 = vld [vmem:[%s432 + $0x60] sm:$0xff]
        %v515 = vld [vmem:[%s432 + $0x68] sm:$0xff]
        %v516 = vld [vmem:[%s432 + $0x70] sm:$0xff]
        %v517 = vld [vmem:[%s432 + $0x78] sm:$0xff]
        %v518 = vld [vmem:[%s432 + $0x80] sm:$0xff]
        %v519 = vld [vmem:[%s432 + $0x88] sm:$0xff]
        %v520 = vld [vmem:[%s432 + $0x90] sm:$0xff]
        %v521 = vld [vmem:[%s432 + $0x98] sm:$0xff]
        %v522 = vld [vmem:[%s432 + $0xa0] sm:$0xff]
        %v523 = vld [vmem:[%s432 + $0xa8] sm:$0xff]
        %v524 = vld [vmem:[%s432 + $0xb0] sm:$0xff]
        %v525 = vld [vmem:[%s432 + $0xb8] sm:$0xff]
        %v526 = vld [vmem:[%s432 + $0xc0] sm:$0xff]
        %v527 = vld [vmem:[%s432 + $0xc8] sm:$0xff]
        %v528 = vld [vmem:[%s432 + $0xd0] sm:$0xff]
        %v529 = vld [vmem:[%s432 + $0xd8] sm:$0xff]
        %v530 = vld [vmem:[%s432 + $0xe0] sm:$0xff]
        %v531 = vld [vmem:[%s432 + $0xe8] sm:$0xff]
        %v532 = vld [vmem:[%s432 + $0xf0] sm:$0xff]
        %v533 = vld [vmem:[%s432 + $0xf8] sm:$0xff]
        %v534 = vld [vmem:[%s375] sm:$0xff]
        %v535 = vld [vmem:[%s375 + $0x8] sm:$0xff]
        %v536 = vld [vmem:[%s375 + $0x10] sm:$0xff]
        %v537 = vld [vmem:[%s375 + $0x18] sm:$0xff]
        %v538 = vld [vmem:[%s375 + $0x20] sm:$0xff]
        %v539 = vld [vmem:[%s375 + $0x28] sm:$0xff]
        %v540 = vld [vmem:[%s375 + $0x30] sm:$0xff]
        %v541 = vld [vmem:[%s375 + $0x38] sm:$0xff]
        %v542 = vld [vmem:[%s375 + $0x40] sm:$0xff]
        %v543 = vld [vmem:[%s375 + $0x48] sm:$0xff]
        %v544 = vld [vmem:[%s375 + $0x50] sm:$0xff]
        %v545 = vld [vmem:[%s375 + $0x58] sm:$0xff]
        %v546 = vld [vmem:[%s375 + $0x60] sm:$0xff]
        %v547 = vld [vmem:[%s375 + $0x68] sm:$0xff]
        %v548 = vld [vmem:[%s375 + $0x70] sm:$0xff]
        %v549 = vld [vmem:[%s375 + $0x78] sm:$0xff]
        %v550 = vld [vmem:[%s375 + $0x80] sm:$0xff]
        %v551 = vld [vmem:[%s375 + $0x88] sm:$0xff]
        %v552 = vld [vmem:[%s375 + $0x90] sm:$0xff]
        %v553 = vld [vmem:[%s375 + $0x98] sm:$0xff]
        %v554 = vld [vmem:[%s375 + $0xa0] sm:$0xff]
        %v555 = vld [vmem:[%s375 + $0xa8] sm:$0xff]
        %v556 = vld [vmem:[%s375 + $0xb0] sm:$0xff]
        %v557 = vld [vmem:[%s375 + $0xb8] sm:$0xff]
        %v558 = vld [vmem:[%s375 + $0xc0] sm:$0xff]
        %v559 = vld [vmem:[%s375 + $0xc8] sm:$0xff]
        %v560 = vld [vmem:[%s375 + $0xd0] sm:$0xff]
        %v561 = vld [vmem:[%s375 + $0xd8] sm:$0xff]
        %v562 = vld [vmem:[%s375 + $0xe0] sm:$0xff]
        %v563 = vld [vmem:[%s375 + $0xe8] sm:$0xff]
        %v564 = vld [vmem:[%s375 + $0xf0] sm:$0xff]
        %v565 = vld [vmem:[%s375 + $0xf8] sm:$0xff]
        %v566 = vstv %s501
        %v567 = vmul.f32 %v566, %v534
        %v568 = vmul.f32 %v566, %v535
        %v569 = vmul.f32 %v566, %v536
        %v570 = vmul.f32 %v566, %v537
        %v571 = vmul.f32 %v566, %v538
        %v572 = vmul.f32 %v566, %v539
        %v573 = vmul.f32 %v566, %v540
        %v574 = vmul.f32 %v566, %v541
        %v575 = vmul.f32 %v566, %v542
        %v576 = vmul.f32 %v566, %v543
        %v577 = vmul.f32 %v566, %v544
        %v578 = vmul.f32 %v566, %v545
        %v579 = vmul.f32 %v566, %v546
        %v580 = vmul.f32 %v566, %v547
        %v581 = vmul.f32 %v566, %v548
        %v582 = vmul.f32 %v566, %v549
        %v583 = vmul.f32 %v566, %v550
        %v584 = vmul.f32 %v566, %v551
        %v585 = vmul.f32 %v566, %v552
        %v586 = vmul.f32 %v566, %v553
        %v587 = vmul.f32 %v566, %v554
        %v588 = vmul.f32 %v566, %v555
        %v589 = vmul.f32 %v566, %v556
        %v590 = vmul.f32 %v566, %v557
        %v591 = vmul.f32 %v566, %v558
        %v592 = vmul.f32 %v566, %v559
        %v593 = vmul.f32 %v566, %v560
        %v594 = vmul.f32 %v566, %v561
        %v595 = vmul.f32 %v566, %v562
        %v596 = vmul.f32 %v566, %v563
        %v597 = vmul.f32 %v566, %v564
        %v598 = vmul.f32 %v566, %v565
        %v599 = vadd.f32 %v502, %v567
        %v600 = vadd.f32 %v503, %v568
        %v601 = vadd.f32 %v504, %v569
        %v602 = vadd.f32 %v505, %v570
        %v603 = vadd.f32 %v506, %v571
        %v604 = vadd.f32 %v507, %v572
        %v605 = vadd.f32 %v508, %v573
        %v606 = vadd.f32 %v509, %v574
        %v607 = vadd.f32 %v510, %v575
        %v608 = vadd.f32 %v511, %v576
        %v609 = vadd.f32 %v512, %v577
        %v610 = vadd.f32 %v513, %v578
        %v611 = vadd.f32 %v514, %v579
        %v612 = vadd.f32 %v515, %v580
        %v613 = vadd.f32 %v516, %v581
        %v614 = vadd.f32 %v517, %v582
        %v615 = vadd.f32 %v518, %v583
        %v616 = vadd.f32 %v519, %v584
        %v617 = vadd.f32 %v520, %v585
        %v618 = vadd.f32 %v521, %v586
        %v619 = vadd.f32 %v522, %v587
        %v620 = vadd.f32 %v523, %v588
        %v621 = vadd.f32 %v524, %v589
        %v622 = vadd.f32 %v525, %v590
        %v623 = vadd.f32 %v526, %v591
        %v624 = vadd.f32 %v527, %v592
        %v625 = vadd.f32 %v528, %v593
        %v626 = vadd.f32 %v529, %v594
        %v627 = vadd.f32 %v530, %v595
        %v628 = vadd.f32 %v531, %v596
        %v629 = vadd.f32 %v532, %v597
        %v630 = vadd.f32 %v533, %v598
        %631 = vst [vmem:[%s432] sm:$0xff] %v599
        %632 = vst [vmem:[%s432 + $0x8] sm:$0xff] %v600
        %633 = vst [vmem:[%s432 + $0x10] sm:$0xff] %v601
        %634 = vst [vmem:[%s432 + $0x18] sm:$0xff] %v602
        %635 = vst [vmem:[%s432 + $0x20] sm:$0xff] %v603
        %636 = vst [vmem:[%s432 + $0x28] sm:$0xff] %v604
        %637 = vst [vmem:[%s432 + $0x30] sm:$0xff] %v605
        %638 = vst [vmem:[%s432 + $0x38] sm:$0xff] %v606
        %639 = vst [vmem:[%s432 + $0x40] sm:$0xff] %v607
        %640 = vst [vmem:[%s432 + $0x48] sm:$0xff] %v608
        %641 = vst [vmem:[%s432 + $0x50] sm:$0xff] %v609
        %642 = vst [vmem:[%s432 + $0x58] sm:$0xff] %v610
        %643 = vst [vmem:[%s432 + $0x60] sm:$0xff] %v611
        %644 = vst [vmem:[%s432 + $0x68] sm:$0xff] %v612
        %645 = vst [vmem:[%s432 + $0x70] sm:$0xff] %v613
        %646 = vst [vmem:[%s432 + $0x78] sm:$0xff] %v614
        %647 = vst [vmem:[%s432 + $0x80] sm:$0xff] %v615
        %648 = vst [vmem:[%s432 + $0x88] sm:$0xff] %v616
        %649 = vst [vmem:[%s432 + $0x90] sm:$0xff] %v617
        %650 = vst [vmem:[%s432 + $0x98] sm:$0xff] %v618
        %651 = vst [vmem:[%s432 + $0xa0] sm:$0xff] %v619
        %652 = vst [vmem:[%s432 + $0xa8] sm:$0xff] %v620
        %653 = vst [vmem:[%s432 + $0xb0] sm:$0xff] %v621
        %654 = vst [vmem:[%s432 + $0xb8] sm:$0xff] %v622
        %655 = vst [vmem:[%s432 + $0xc0] sm:$0xff] %v623
        %656 = vst [vmem:[%s432 + $0xc8] sm:$0xff] %v624
        %657 = vst [vmem:[%s432 + $0xd0] sm:$0xff] %v625
        %658 = vst [vmem:[%s432 + $0xd8] sm:$0xff] %v626
        %659 = vst [vmem:[%s432 + $0xe0] sm:$0xff] %v627
        %660 = vst [vmem:[%s432 + $0xe8] sm:$0xff] %v628
        %661 = vst [vmem:[%s432 + $0xf0] sm:$0xff] %v629
        %662 = vst [vmem:[%s432 + $0xf8] sm:$0xff] %v630
        %s663 = sld [smem:[#allocation3 + $0x1]]
        %s664 = smax.f32 %s663, 0.0
        %s665 = smin.f32 %s664, 1.0
        %v666 = vld [vmem:[%s432] sm:$0xff]
        %v667 = vld [vmem:[%s432 + $0x8] sm:$0xff]
        %v668 = vld [vmem:[%s432 + $0x10] sm:$0xff]
        %v669 = vld [vmem:[%s432 + $0x18] sm:$0xff]
        %v670 = vld [vmem:[%s432 + $0x20] sm:$0xff]
        %v671 = vld [vmem:[%s432 + $0x28] sm:$0xff]
        %v672 = vld [vmem:[%s432 + $0x30] sm:$0xff]
        %v673 = vld [vmem:[%s432 + $0x38] sm:$0xff]
        %v674 = vld [vmem:[%s432 + $0x40] sm:$0xff]
        %v675 = vld [vmem:[%s432 + $0x48] sm:$0xff]
        %v676 = vld [vmem:[%s432 + $0x50] sm:$0xff]
        %v677 = vld [vmem:[%s432 + $0x58] sm:$0xff]
        %v678 = vld [vmem:[%s432 + $0x60] sm:$0xff]
        %v679 = vld [vmem:[%s432 + $0x68] sm:$0xff]
        %v680 = vld [vmem:[%s432 + $0x70] sm:$0xff]
        %v681 = vld [vmem:[%s432 + $0x78] sm:$0xff]
        %v682 = vld [vmem:[%s432 + $0x80] sm:$0xff]
        %v683 = vld [vmem:[%s432 + $0x88] sm:$0xff]
        %v684 = vld [vmem:[%s432 + $0x90] sm:$0xff]
        %v685 = vld [vmem:[%s432 + $0x98] sm:$0xff]
        %v686 = vld [vmem:[%s432 + $0xa0] sm:$0xff]
        %v687 = vld [vmem:[%s432 + $0xa8] sm:$0xff]
        %v688 = vld [vmem:[%s432 + $0xb0] sm:$0xff]
        %v689 = vld [vmem:[%s432 + $0xb8] sm:$0xff]
        %v690 = vld [vmem:[%s432 + $0xc0] sm:$0xff]
        %v691 = vld [vmem:[%s432 + $0xc8] sm:$0xff]
        %v692 = vld [vmem:[%s432 + $0xd0] sm:$0xff]
        %v693 = vld [vmem:[%s432 + $0xd8] sm:$0xff]
        %v694 = vld [vmem:[%s432 + $0xe0] sm:$0xff]
        %v695 = vld [vmem:[%s432 + $0xe8] sm:$0xff]
        %v696 = vld [vmem:[%s432 + $0xf0] sm:$0xff]
        %v697 = vld [vmem:[%s432 + $0xf8] sm:$0xff]
        %s698 = scalar_lea.vmem %s375, 256 [#allocation4]
        %v699 = vld [vmem:[%s698] sm:$0xff]
        %v700 = vld [vmem:[%s698 + $0x8] sm:$0xff]
        %v701 = vld [vmem:[%s698 + $0x10] sm:$0xff]
        %v702 = vld [vmem:[%s698 + $0x18] sm:$0xff]
        %v703 = vld [vmem:[%s698 + $0x20] sm:$0xff]
        %v704 = vld [vmem:[%s698 + $0x28] sm:$0xff]
        %v705 = vld [vmem:[%s698 + $0x30] sm:$0xff]
        %v706 = vld [vmem:[%s698 + $0x38] sm:$0xff]
        %v707 = vld [vmem:[%s698 + $0x40] sm:$0xff]
        %v708 = vld [vmem:[%s698 + $0x48] sm:$0xff]
        %v709 = vld [vmem:[%s698 + $0x50] sm:$0xff]
        %v710 = vld [vmem:[%s698 + $0x58] sm:$0xff]
        %v711 = vld [vmem:[%s698 + $0x60] sm:$0xff]
        %v712 = vld [vmem:[%s698 + $0x68] sm:$0xff]
        %v713 = vld [vmem:[%s698 + $0x70] sm:$0xff]
        %v714 = vld [vmem:[%s698 + $0x78] sm:$0xff]
        %v715 = vld [vmem:[%s698 + $0x80] sm:$0xff]
        %v716 = vld [vmem:[%s698 + $0x88] sm:$0xff]
        %v717 = vld [vmem:[%s698 + $0x90] sm:$0xff]
        %v718 = vld [vmem:[%s698 + $0x98] sm:$0xff]
        %v719 = vld [vmem:[%s698 + $0xa0] sm:$0xff]
        %v720 = vld [vmem:[%s698 + $0xa8] sm:$0xff]
        %v721 = vld [vmem:[%s698 + $0xb0] sm:$0xff]
        %v722 = vld [vmem:[%s698 + $0xb8] sm:$0xff]
        %v723 = vld [vmem:[%s698 + $0xc0] sm:$0xff]
        %v724 = vld [vmem:[%s698 + $0xc8] sm:$0xff]
        %v725 = vld [vmem:[%s698 + $0xd0] sm:$0xff]
        %v726 = vld [vmem:[%s698 + $0xd8] sm:$0xff]
        %v727 = vld [vmem:[%s698 + $0xe0] sm:$0xff]
        %v728 = vld [vmem:[%s698 + $0xe8] sm:$0xff]
        %v729 = vld [vmem:[%s698 + $0xf0] sm:$0xff]
        %v730 = vld [vmem:[%s698 + $0xf8] sm:$0xff]
        %v731 = vstv %s665
        %v732 = vmul.f32 %v731, %v699
        %v733 = vmul.f32 %v731, %v700
        %v734 = vmul.f32 %v731, %v701
        %v735 = vmul.f32 %v731, %v702
        %v736 = vmul.f32 %v731, %v703
        %v737 = vmul.f32 %v731, %v704
        %v738 = vmul.f32 %v731, %v705
        %v739 = vmul.f32 %v731, %v706
        %v740 = vmul.f32 %v731, %v707
        %v741 = vmul.f32 %v731, %v708
        %v742 = vmul.f32 %v731, %v709
        %v743 = vmul.f32 %v731, %v710
        %v744 = vmul.f32 %v731, %v711
        %v745 = vmul.f32 %v731, %v712
        %v746 = vmul.f32 %v731, %v713
        %v747 = vmul.f32 %v731, %v714
        %v748 = vmul.f32 %v731, %v715
        %v749 = vmul.f32 %v731, %v716
        %v750 = vmul.f32 %v731, %v717
        %v751 = vmul.f32 %v731, %v718
        %v752 = vmul.f32 %v731, %v719
        %v753 = vmul.f32 %v731, %v720
        %v754 = vmul.f32 %v731, %v721
        %v755 = vmul.f32 %v731, %v722
        %v756 = vmul.f32 %v731, %v723
        %v757 = vmul.f32 %v731, %v724
        %v758 = vmul.f32 %v731, %v725
        %v759 = vmul.f32 %v731, %v726
        %v760 = vmul.f32 %v731, %v727
        %v761 = vmul.f32 %v731, %v728
        %v762 = vmul.f32 %v731, %v729
        %v763 = vmul.f32 %v731, %v730
        %v764 = vadd.f32 %v666, %v732
        %v765 = vadd.f32 %v667, %v733
        %v766 = vadd.f32 %v668, %v734
        %v767 = vadd.f32 %v669, %v735
        %v768 = vadd.f32 %v670, %v736
        %v769 = vadd.f32 %v671, %v737
        %v770 = vadd.f32 %v672, %v738
        %v771 = vadd.f32 %v673, %v739
        %v772 = vadd.f32 %v674, %v740
        %v773 = vadd.f32 %v675, %v741
        %v774 = vadd.f32 %v676, %v742
        %v775 = vadd.f32 %v677, %v743
        %v776 = vadd.f32 %v678, %v744
        %v777 = vadd.f32 %v679, %v745
        %v778 = vadd.f32 %v680, %v746
        %v779 = vadd.f32 %v681, %v747
        %v780 = vadd.f32 %v682, %v748
        %v781 = vadd.f32 %v683, %v749
        %v782 = vadd.f32 %v684, %v750
        %v783 = vadd.f32 %v685, %v751
        %v784 = vadd.f32 %v686, %v752
        %v785 = vadd.f32 %v687, %v753
        %v786 = vadd.f32 %v688, %v754
        %v787 = vadd.f32 %v689, %v755
        %v788 = vadd.f32 %v690, %v756
        %v789 = vadd.f32 %v691, %v757
        %v790 = vadd.f32 %v692, %v758
        %v791 = vadd.f32 %v693, %v759
        %v792 = vadd.f32 %v694, %v760
        %v793 = vadd.f32 %v695, %v761
        %v794 = vadd.f32 %v696, %v762
        %v795 = vadd.f32 %v697, %v763
        %796 = vst [vmem:[%s432] sm:$0xff] %v764
        %797 = vst [vmem:[%s432 + $0x8] sm:$0xff] %v765
        %798 = vst [vmem:[%s432 + $0x10] sm:$0xff] %v766
        %799 = vst [vmem:[%s432 + $0x18] sm:$0xff] %v767
        %800 = vst [vmem:[%s432 + $0x20] sm:$0xff] %v768
        %801 = vst [vmem:[%s432 + $0x28] sm:$0xff] %v769
        %802 = vst [vmem:[%s432 + $0x30] sm:$0xff] %v770
        %803 = vst [vmem:[%s432 + $0x38] sm:$0xff] %v771
        %804 = vst [vmem:[%s432 + $0x40] sm:$0xff] %v772
        %805 = vst [vmem:[%s432 + $0x48] sm:$0xff] %v773
        %806 = vst [vmem:[%s432 + $0x50] sm:$0xff] %v774
        %807 = vst [vmem:[%s432 + $0x58] sm:$0xff] %v775
        %808 = vst [vmem:[%s432 + $0x60] sm:$0xff] %v776
        %809 = vst [vmem:[%s432 + $0x68] sm:$0xff] %v777
        %810 = vst [vmem:[%s432 + $0x70] sm:$0xff] %v778
        %811 = vst [vmem:[%s432 + $0x78] sm:$0xff] %v779
        %812 = vst [vmem:[%s432 + $0x80] sm:$0xff] %v780
        %813 = vst [vmem:[%s432 + $0x88] sm:$0xff] %v781
        %814 = vst [vmem:[%s432 + $0x90] sm:$0xff] %v782
        %815 = vst [vmem:[%s432 + $0x98] sm:$0xff] %v783
        %816 = vst [vmem:[%s432 + $0xa0] sm:$0xff] %v784
        %817 = vst [vmem:[%s432 + $0xa8] sm:$0xff] %v785
        %818 = vst [vmem:[%s432 + $0xb0] sm:$0xff] %v786
        %819 = vst [vmem:[%s432 + $0xb8] sm:$0xff] %v787
        %820 = vst [vmem:[%s432 + $0xc0] sm:$0xff] %v788
        %821 = vst [vmem:[%s432 + $0xc8] sm:$0xff] %v789
        %822 = vst [vmem:[%s432 + $0xd0] sm:$0xff] %v790
        %823 = vst [vmem:[%s432 + $0xd8] sm:$0xff] %v791
        %824 = vst [vmem:[%s432 + $0xe0] sm:$0xff] %v792
        %825 = vst [vmem:[%s432 + $0xe8] sm:$0xff] %v793
        %826 = vst [vmem:[%s432 + $0xf0] sm:$0xff] %v794
        %827 = vst [vmem:[%s432 + $0xf8] sm:$0xff] %v795
        %s828 = sld [smem:[#allocation3 + $0x2]]
        %s829 = smax.f32 %s828, 0.0
        %s830 = smin.f32 %s829, 1.0
        %v831 = vld [vmem:[%s432] sm:$0xff]
        %v832 = vld [vmem:[%s432 + $0x8] sm:$0xff]
        %v833 = vld [vmem:[%s432 + $0x10] sm:$0xff]
        %v834 = vld [vmem:[%s432 + $0x18] sm:$0xff]
        %v835 = vld [vmem:[%s432 + $0x20] sm:$0xff]
        %v836 = vld [vmem:[%s432 + $0x28] sm:$0xff]
        %v837 = vld [vmem:[%s432 + $0x30] sm:$0xff]
        %v838 = vld [vmem:[%s432 + $0x38] sm:$0xff]
        %v839 = vld [vmem:[%s432 + $0x40] sm:$0xff]
        %v840 = vld [vmem:[%s432 + $0x48] sm:$0xff]
        %v841 = vld [vmem:[%s432 + $0x50] sm:$0xff]
        %v842 = vld [vmem:[%s432 + $0x58] sm:$0xff]
        %v843 = vld [vmem:[%s432 + $0x60] sm:$0xff]
        %v844 = vld [vmem:[%s432 + $0x68] sm:$0xff]
        %v845 = vld [vmem:[%s432 + $0x70] sm:$0xff]
        %v846 = vld [vmem:[%s432 + $0x78] sm:$0xff]
        %v847 = vld [vmem:[%s432 + $0x80] sm:$0xff]
        %v848 = vld [vmem:[%s432 + $0x88] sm:$0xff]
        %v849 = vld [vmem:[%s432 + $0x90] sm:$0xff]
        %v850 = vld [vmem:[%s432 + $0x98] sm:$0xff]
        %v851 = vld [vmem:[%s432 + $0xa0] sm:$0xff]
        %v852 = vld [vmem:[%s432 + $0xa8] sm:$0xff]
        %v853 = vld [vmem:[%s432 + $0xb0] sm:$0xff]
        %v854 = vld [vmem:[%s432 + $0xb8] sm:$0xff]
        %v855 = vld [vmem:[%s432 + $0xc0] sm:$0xff]
        %v856 = vld [vmem:[%s432 + $0xc8] sm:$0xff]
        %v857 = vld [vmem:[%s432 + $0xd0] sm:$0xff]
        %v858 = vld [vmem:[%s432 + $0xd8] sm:$0xff]
        %v859 = vld [vmem:[%s432 + $0xe0] sm:$0xff]
        %v860 = vld [vmem:[%s432 + $0xe8] sm:$0xff]
        %v861 = vld [vmem:[%s432 + $0xf0] sm:$0xff]
        %v862 = vld [vmem:[%s432 + $0xf8] sm:$0xff]
        %s863 = scalar_lea.vmem %s375, 512 [#allocation4]
        %v864 = vld [vmem:[%s863] sm:$0xff]
        %v865 = vld [vmem:[%s863 + $0x8] sm:$0xff]
        %v866 = vld [vmem:[%s863 + $0x10] sm:$0xff]
        %v867 = vld [vmem:[%s863 + $0x18] sm:$0xff]
        %v868 = vld [vmem:[%s863 + $0x20] sm:$0xff]
        %v869 = vld [vmem:[%s863 + $0x28] sm:$0xff]
        %v870 = vld [vmem:[%s863 + $0x30] sm:$0xff]
        %v871 = vld [vmem:[%s863 + $0x38] sm:$0xff]
        %v872 = vld [vmem:[%s863 + $0x40] sm:$0xff]
        %v873 = vld [vmem:[%s863 + $0x48] sm:$0xff]
        %v874 = vld [vmem:[%s863 + $0x50] sm:$0xff]
        %v875 = vld [vmem:[%s863 + $0x58] sm:$0xff]
        %v876 = vld [vmem:[%s863 + $0x60] sm:$0xff]
        %v877 = vld [vmem:[%s863 + $0x68] sm:$0xff]
        %v878 = vld [vmem:[%s863 + $0x70] sm:$0xff]
        %v879 = vld [vmem:[%s863 + $0x78] sm:$0xff]
        %v880 = vld [vmem:[%s863 + $0x80] sm:$0xff]
        %v881 = vld [vmem:[%s863 + $0x88] sm:$0xff]
        %v882 = vld [vmem:[%s863 + $0x90] sm:$0xff]
        %v883 = vld [vmem:[%s863 + $0x98] sm:$0xff]
        %v884 = vld [vmem:[%s863 + $0xa0] sm:$0xff]
        %v885 = vld [vmem:[%s863 + $0xa8] sm:$0xff]
        %v886 = vld [vmem:[%s863 + $0xb0] sm:$0xff]
        %v887 = vld [vmem:[%s863 + $0xb8] sm:$0xff]
        %v888 = vld [vmem:[%s863 + $0xc0] sm:$0xff]
        %v889 = vld [vmem:[%s863 + $0xc8] sm:$0xff]
        %v890 = vld [vmem:[%s863 + $0xd0] sm:$0xff]
        %v891 = vld [vmem:[%s863 + $0xd8] sm:$0xff]
        %v892 = vld [vmem:[%s863 + $0xe0] sm:$0xff]
        %v893 = vld [vmem:[%s863 + $0xe8] sm:$0xff]
        %v894 = vld [vmem:[%s863 + $0xf0] sm:$0xff]
        %v895 = vld [vmem:[%s863 + $0xf8] sm:$0xff]
        %v896 = vstv %s830
        %v897 = vmul.f32 %v896, %v864
        %v898 = vmul.f32 %v896, %v865
        %v899 = vmul.f32 %v896, %v866
        %v900 = vmul.f32 %v896, %v867
        %v901 = vmul.f32 %v896, %v868
        %v902 = vmul.f32 %v896, %v869
        %v903 = vmul.f32 %v896, %v870
        %v904 = vmul.f32 %v896, %v871
        %v905 = vmul.f32 %v896, %v872
        %v906 = vmul.f32 %v896, %v873
        %v907 = vmul.f32 %v896, %v874
        %v908 = vmul.f32 %v896, %v875
        %v909 = vmul.f32 %v896, %v876
        %v910 = vmul.f32 %v896, %v877
        %v911 = vmul.f32 %v896, %v878
        %v912 = vmul.f32 %v896, %v879
        %v913 = vmul.f32 %v896, %v880
        %v914 = vmul.f32 %v896, %v881
        %v915 = vmul.f32 %v896, %v882
        %v916 = vmul.f32 %v896, %v883
        %v917 = vmul.f32 %v896, %v884
        %v918 = vmul.f32 %v896, %v885
        %v919 = vmul.f32 %v896, %v886
        %v920 = vmul.f32 %v896, %v887
        %v921 = vmul.f32 %v896, %v888
        %v922 = vmul.f32 %v896, %v889
        %v923 = vmul.f32 %v896, %v890
        %v924 = vmul.f32 %v896, %v891
        %v925 = vmul.f32 %v896, %v892
        %v926 = vmul.f32 %v896, %v893
        %v927 = vmul.f32 %v896, %v894
        %v928 = vmul.f32 %v896, %v895
        %v929 = vadd.f32 %v831, %v897
        %v930 = vadd.f32 %v832, %v898
        %v931 = vadd.f32 %v833, %v899
        %v932 = vadd.f32 %v834, %v900
        %v933 = vadd.f32 %v835, %v901
        %v934 = vadd.f32 %v836, %v902
        %v935 = vadd.f32 %v837, %v903
        %v936 = vadd.f32 %v838, %v904
        %v937 = vadd.f32 %v839, %v905
        %v938 = vadd.f32 %v840, %v906
        %v939 = vadd.f32 %v841, %v907
        %v940 = vadd.f32 %v842, %v908
        %v941 = vadd.f32 %v843, %v909
        %v942 = vadd.f32 %v844, %v910
        %v943 = vadd.f32 %v845, %v911
        %v944 = vadd.f32 %v846, %v912
        %v945 = vadd.f32 %v847, %v913
        %v946 = vadd.f32 %v848, %v914
        %v947 = vadd.f32 %v849, %v915
        %v948 = vadd.f32 %v850, %v916
        %v949 = vadd.f32 %v851, %v917
        %v950 = vadd.f32 %v852, %v918
        %v951 = vadd.f32 %v853, %v919
        %v952 = vadd.f32 %v854, %v920
        %v953 = vadd.f32 %v855, %v921
        %v954 = vadd.f32 %v856, %v922
        %v955 = vadd.f32 %v857, %v923
        %v956 = vadd.f32 %v858, %v924
        %v957 = vadd.f32 %v859, %v925
        %v958 = vadd.f32 %v860, %v926
        %v959 = vadd.f32 %v861, %v927
        %v960 = vadd.f32 %v862, %v928
        %961 = vst [vmem:[%s432] sm:$0xff] %v929
        %962 = vst [vmem:[%s432 + $0x8] sm:$0xff] %v930
        %963 = vst [vmem:[%s432 + $0x10] sm:$0xff] %v931
        %964 = vst [vmem:[%s432 + $0x18] sm:$0xff] %v932
        %965 = vst [vmem:[%s432 + $0x20] sm:$0xff] %v933
        %966 = vst [vmem:[%s432 + $0x28] sm:$0xff] %v934
        %967 = vst [vmem:[%s432 + $0x30] sm:$0xff] %v935
        %968 = vst [vmem:[%s432 + $0x38] sm:$0xff] %v936
        %969 = vst [vmem:[%s432 + $0x40] sm:$0xff] %v937
        %970 = vst [vmem:[%s432 + $0x48] sm:$0xff] %v938
        %971 = vst [vmem:[%s432 + $0x50] sm:$0xff] %v939
        %972 = vst [vmem:[%s432 + $0x58] sm:$0xff] %v940
        %973 = vst [vmem:[%s432 + $0x60] sm:$0xff] %v941
        %974 = vst [vmem:[%s432 + $0x68] sm:$0xff] %v942
        %975 = vst [vmem:[%s432 + $0x70] sm:$0xff] %v943
        %976 = vst [vmem:[%s432 + $0x78] sm:$0xff] %v944
        %977 = vst [vmem:[%s432 + $0x80] sm:$0xff] %v945
        %978 = vst [vmem:[%s432 + $0x88] sm:$0xff] %v946
        %979 = vst [vmem:[%s432 + $0x90] sm:$0xff] %v947
        %980 = vst [vmem:[%s432 + $0x98] sm:$0xff] %v948
        %981 = vst [vmem:[%s432 + $0xa0] sm:$0xff] %v949
        %982 = vst [vmem:[%s432 + $0xa8] sm:$0xff] %v950
        %983 = vst [vmem:[%s432 + $0xb0] sm:$0xff] %v951
        %984 = vst [vmem:[%s432 + $0xb8] sm:$0xff] %v952
        %985 = vst [vmem:[%s432 + $0xc0] sm:$0xff] %v953
        %986 = vst [vmem:[%s432 + $0xc8] sm:$0xff] %v954
        %987 = vst [vmem:[%s432 + $0xd0] sm:$0xff] %v955
        %988 = vst [vmem:[%s432 + $0xd8] sm:$0xff] %v956
        %989 = vst [vmem:[%s432 + $0xe0] sm:$0xff] %v957
        %990 = vst [vmem:[%s432 + $0xe8] sm:$0xff] %v958
        %991 = vst [vmem:[%s432 + $0xf0] sm:$0xff] %v959
        %992 = vst [vmem:[%s432 + $0xf8] sm:$0xff] %v960
        %s993 = smul.u32 16, %s24
        %s994 = smul.u32 2, %s25
        %p995 = scmp.lt.s32.totalorder %s993, 47
        %s996 = scalar_select %p995, %s993, 47
        %p997 = scmp.lt.s32.totalorder %s994, 1
        %s998 = scalar_select %p997, %s994, 1
        %s999 = smul.addr %s996, 2
        %s1000 = sadd.s32 %s998, %s999
        %s1001 = smul.addr %s1000, 8
        %s1002 = scalar_lea.vmem %s3, %s1001
        // Predicated region
        $region52: #{task_wise_merged_linear.2} parent=46 // pred_check
          %p1003 = pneg %p108
        $region53: #{task_wise_merged_linear.2} parent=46 // pred_check_branch
          %1005 = sbr.rel (%p1003) target = $region55
        $region54: #{task_wise_merged_linear.2} parent=46 // pred_region
          %s1006 = smul.u32 16, %s24
          %s1007 = smul.u32 2, %s25
        $region55: #{task_wise_merged_linear.2} parent=46 // pred_fallthru
          _
      $region47: #{task_wise_merged_linear.2} parent=5 // pred_fallthru
        _
      %p1008 = scmp.le.s32.totalorder 2, %s15
      // Predicated region
      $region56: #{task_wise_merged_linear.2} parent=5 // pred_check
        %p1009 = pneg %p1008
      $region57: #{task_wise_merged_linear.2} parent=5 // pred_check_branch
        %1011 = sbr.rel (%p1009) target = $region59
      $region58: #{task_wise_merged_linear.2} parent=5 // pred_region
        %s1012 = ssub.s32 %s15, 2
        // Predicated region
        $region60: #{task_wise_merged_linear.2} parent=58 // pred_check
          %p1013 = pneg %p114
        $region61: #{task_wise_merged_linear.2} parent=58 // pred_check_branch
          %1015 = sbr.rel (%p1013) target = $region63
        $region62: #{task_wise_merged_linear.2} parent=58 // pred_region
          %s1016 = smul.u32 16, %s26
          %s1017 = smul.u32 2, %s27
          %p1018 = scmp.lt.s32.totalorder %s1016, 47
          %s1019 = scalar_select %p1018, %s1016, 47
          %p1020 = scmp.lt.s32.totalorder %s1017, 1
          %s1021 = scalar_select %p1020, %s1017, 1
          %s1022 = smul.addr %s1019, 2
          %s1023 = sadd.s32 %s1021, %s1022
          %s1024 = smul.addr %s1023, 8
          %s1025 = scalar_lea.vmem %s3, %s1024
        $region63: #{task_wise_merged_linear.2} parent=58 // pred_fallthru
          _
      $region59: #{task_wise_merged_linear.2} parent=5 // pred_fallthru
        _
    $region6: #{task_wise_merged_linear.2} parent=1 // loop_footer
      %s19 = sadd.s32 1, %s15
    $region7: #{task_wise_merged_linear.2} parent=1 // loop_footer_branch
      %14 = sbr.rel target = $region3
    $region8: #{task_wise_merged_linear.2} parent=1 // loop_exit
      _

</llo_original>
